<compile_context>
chip_gen: v7x
topology: tpu7x:2x2x1
jax: 0.10.0
libtpu: 0.0.40
codegen_flags: <defaults>
</compile_context>

<pallas_src>
import jax
import jax.numpy as jnp
from jax.experimental import pallas as pl
from jax.experimental.pallas import tpu as pltpu

NEG_SLOPE = 0.01   # nn.LeakyReLU() default
EPS = 1e-5         # nn.InstanceNorm2d() default (affine=False, biased variance)


def downsample_kernel(x_ref, w1_ref, w2_ref, o_ref):
    # x_ref : (Nb, Hp, W, 2C)  pre-pool input, W-pairs folded into channels
    # w*_ref: (9C, C)          im2col-reshaped 3x3 conv weights (HWIO flattened)
    # o_ref : (Nb, C, H*W)     output, NCHW-flat per batch element
    nb, Hp, W, C2 = x_ref.shape
    C = C2 // 2
    H = Hp // 2
    HW = H * W

    x = x_ref[...]                                            # (Nb, Hp, W, 2C)

    # ---- MaxPool2d(2): W direction via lane slices, H direction via row pairing ----
    xw = jnp.maximum(x[..., :C], x[..., C:])                  # (Nb, Hp, W, C)
    xe = xw.reshape(nb, H, 2 * W, C)                          # [:, :, :W]=even row, [:, :, W:]=odd row
    xp = jnp.maximum(xe[:, :, :W, :], xe[:, :, W:, :])        # (Nb, H, W, C)

    # ---- LeakyReLU ----
    xa = jnp.where(xp > 0, xp, NEG_SLOPE * xp)

    # ---- 3x3 "same" conv as a single im2col matmul (no scratch, no bias) ----
    def conv3x3(a, w_ref):                                    # a: (Nb, H, W, C)
        zw = jnp.zeros((nb, H, 1, C), jnp.float32)
        aw = jnp.concatenate([zw, a, zw], axis=2)             # (Nb, H, W+2, C)
        zh = jnp.zeros((nb, 1, W + 2, C), jnp.float32)
        ap = jnp.concatenate([zh, aw, zh], axis=1)            # (Nb, H+2, W+2, C)
        cols = []
        for ky in range(3):
            for kx in range(3):
                cols.append(ap[:, ky:ky + H, kx:kx + W, :])   # (Nb, H, W, C) shifted views
        patches = jnp.concatenate(cols, axis=-1)              # (Nb, H, W, 9C)
        patches = patches.reshape(nb * HW, 9 * C)             # leading-dim collapse (cheap)
        return jnp.dot(patches, w_ref[...],
                       preferred_element_type=jnp.float32)    # (Nb*H*W, C)

    # ---- InstanceNorm2d: per-(batch, channel) mean/var over spatial, biased, no affine ----
    def inst_norm(y_flat):                                    # (Nb*HW, C) -> (Nb, HW, C)
        y = y_flat.reshape(nb, HW, C)
        m = jnp.mean(y, axis=1, keepdims=True)
        v = jnp.mean((y - m) ** 2, axis=1, keepdims=True)
        return (y - m) * jax.lax.rsqrt(v + EPS)

    y1 = inst_norm(conv3x3(xa, w1_ref))                       # (Nb, HW, C)
    y2 = inst_norm(conv3x3(y1.reshape(nb, H, W, C), w2_ref))  # (Nb, HW, C)

    # ---- lane-dense, NCHW-ordered write: (Nb, C, H*W) ----
    o_ref[...] = jnp.transpose(y2, (0, 2, 1))


def downsample(x_nchw, w1, b1, w2, b2, *, batch_block=2):
    """x_nchw: (N, C, Hp, Wp) float32; w*: (3,3,C,C) HWIO; b*: (1,C) (unused, see below).
    Returns (N, C, Hp//2, Wp//2)."""
    N, C, Hp, Wp = x_nchw.shape
    H, W = Hp // 2, Wp // 2
    HW = H * W

    nb = min(batch_block, N)
    n_pad = (-N) % nb
    n_total = N + n_pad

    # Channels-last, then fold adjacent W pixels into the channel (lane) dim.
    x = jnp.transpose(x_nchw, (0, 2, 3, 1)).astype(jnp.float32)      # (N, Hp, Wp, C)
    if n_pad:
        x = jnp.concatenate([x, jnp.zeros((n_pad, Hp, Wp, C), jnp.float32)], axis=0)
    x = x.reshape(n_total, Hp, W, 2 * C)                             # (N', Hp, W, 2C)

    # (3,3,Cin,Cout) -> (9*Cin, Cout); row order matches the in-kernel patch concat order.
    w1m = w1.reshape(9 * C, C).astype(jnp.float32)
    w2m = w2.reshape(9 * C, C).astype(jnp.float32)
    # b1/b2 intentionally not passed: bias before an affine-free InstanceNorm cancels exactly.
    del b1, b2

    out = pl.pallas_call(
        downsample_kernel,
        out_shape=jax.ShapeDtypeStruct((n_total, C, HW), jnp.float32),
        grid=(n_total // nb,),
        in_specs=[
            pl.BlockSpec((nb, Hp, W, 2 * C), lambda n: (n, 0, 0, 0)),
            pl.BlockSpec((9 * C, C), lambda n: (0, 0)),
            pl.BlockSpec((9 * C, C), lambda n: (0, 0)),
        ],
        out_specs=pl.BlockSpec((nb, C, HW), lambda n: (n, 0, 0)),
        compiler_params=pltpu.CompilerParams(dimension_semantics=("parallel",)),
    )(x, w1m, w2m)

    return out[:N].reshape(N, C, H, W)                               # already NCHW; reshape is free


def reference(x_nchw, w1, b1, w2, b2):
    """Pure-JAX reference with the original module semantics (biases included)."""
    x = jnp.transpose(x_nchw, (0, 2, 3, 1))
    xp = jnp.maximum(jnp.maximum(x[:, 0::2, 0::2, :], x[:, 0::2, 1::2, :]),
                     jnp.maximum(x[:, 1::2, 0::2, :], x[:, 1::2, 1::2, :]))
    xa = jnp.where(xp > 0, xp, NEG_SLOPE * xp)

    def conv(inp, w, b):
        y = jax.lax.conv_general_dilated(
            inp, w, (1, 1), 'SAME',
            dimension_numbers=('NHWC', 'HWIO', 'NHWC'))
        return y + b.reshape(1, 1, 1, -1)

    def inorm(y):
        m = jnp.mean(y, axis=(1, 2), keepdims=True)
        v = jnp.mean((y - m) ** 2, axis=(1, 2), keepdims=True)
        return (y - m) * jax.lax.rsqrt(v + EPS)

    y1 = inorm(conv(xa, w1, b1))
    y2 = inorm(conv(y1, w2, b2))
    return jnp.transpose(y2, (0, 3, 1, 2))


if __name__ == "__main__":
    # Small shapes consistent with the module (Downsample: in_channels == out_channels).
    N, C, Hp, Wp = 2, 8, 16, 16
    key = jax.random.PRNGKey(0)
    k1, k2, k3, k4, k5 = jax.random.split(key, 5)

    x = jax.random.normal(k1, (N, C, Hp, Wp), jnp.float32)
    w1 = jax.random.normal(k2, (3, 3, C, C), jnp.float32) * 0.1
    b1 = jax.random.normal(k3, (1, C), jnp.float32) * 0.1
    w2 = jax.random.normal(k4, (3, 3, C, C), jnp.float32) * 0.1
    b2 = jax.random.normal(k5, (1, C), jnp.float32) * 0.1

    out = downsample(x, w1, b1, w2, b2)
    out = jax.block_until_ready(out)

    ref = reference(x, w1, b1, w2, b2)
    err = float(jnp.max(jnp.abs(out - ref)))
    assert out.shape == (N, C, Hp // 2, Wp // 2), out.shape
    assert jnp.allclose(out, ref, atol=2e-3, rtol=2e-3), f"max abs err {err}"

    print("KERNEL_OK")
</pallas_src>

<mosaic_0001>
module attributes {stable_mosaic.version = 11 : i64} {
  func.func @downsample_kernel(%arg0: i32, %arg1: memref<2x16x8x16xf32, #tpu.memory_space<vmem>>, %arg2: memref<72x8xf32, #tpu.memory_space<vmem>>, %arg3: memref<72x8xf32, #tpu.memory_space<vmem>>, %arg4: memref<2x8x64xf32, #tpu.memory_space<vmem>>) attributes {dimension_semantics = [#tpu.dimension_semantics<parallel>], iteration_bounds = array<i64: 1>, scalar_prefetch = 0 : i64, scratch_operands = 0 : i64, tpu.core_type = #tpu.core_type<tc>, window_params = [{transform_indices = @transform_0, window_bounds = array<i64: 2, 16, 8, 16>}, {pipeline_mode = #tpu.pipeline_mode<synchronous>, transform_indices = @transform_1, window_bounds = array<i64: 72, 8>}, {pipeline_mode = #tpu.pipeline_mode<synchronous>, transform_indices = @transform_2, window_bounds = array<i64: 72, 8>}, {transform_indices = @transform_3, window_bounds = array<i64: 2, 8, 64>}]} {
    %c0 = arith.constant 0 : index
    %c0_0 = arith.constant 0 : index
    %c0_1 = arith.constant 0 : index
    %c0_2 = arith.constant 0 : index
    %0 = vector.load %arg1[%c0, %c0_0, %c0_1, %c0_2] : memref<2x16x8x16xf32, #tpu.memory_space<vmem>>, vector<2x16x8x16xf32>
    %1 = vector.extract_strided_slice %0 {offsets = [0, 0, 0, 0], sizes = [2, 16, 8, 8], strides = [1, 1, 1, 1]} : vector<2x16x8x16xf32> to vector<2x16x8x8xf32>
    %2 = vector.extract_strided_slice %0 {offsets = [0, 0, 0, 8], sizes = [2, 16, 8, 8], strides = [1, 1, 1, 1]} : vector<2x16x8x16xf32> to vector<2x16x8x8xf32>
    %3 = arith.maximumf %1, %2 : vector<2x16x8x8xf32>
    %4 = vector.shape_cast %3 : vector<2x16x8x8xf32> to vector<2x8x16x8xf32>
    %5 = vector.extract_strided_slice %4 {offsets = [0, 0, 0, 0], sizes = [2, 8, 8, 8], strides = [1, 1, 1, 1]} : vector<2x8x16x8xf32> to vector<2x8x8x8xf32>
    %6 = vector.extract_strided_slice %4 {offsets = [0, 0, 8, 0], sizes = [2, 8, 8, 8], strides = [1, 1, 1, 1]} : vector<2x8x16x8xf32> to vector<2x8x8x8xf32>
    %7 = arith.maximumf %5, %6 : vector<2x8x8x8xf32>
    %cst = arith.constant 0.000000e+00 : f32
    %8 = vector.broadcast %cst : f32 to vector<2x8x8x8xf32>
    %9 = arith.cmpf ogt, %7, %8 : vector<2x8x8x8xf32>
    %cst_3 = arith.constant 0.00999999977 : f32
    %10 = vector.broadcast %cst_3 : f32 to vector<2x8x8x8xf32>
    %11 = arith.mulf %10, %7 : vector<2x8x8x8xf32>
    %12 = arith.select %9, %7, %11 : vector<2x8x8x8xi1>, vector<2x8x8x8xf32>
    %cst_4 = arith.constant 0.000000e+00 : f32
    %13 = vector.broadcast %cst_4 : f32 to vector<2x8x1x8xf32>
    %14 = tpu.concatenate %13, %12, %13 in 2 : vector<2x8x1x8xf32>, vector<2x8x8x8xf32>, vector<2x8x1x8xf32> -> vector<2x8x10x8xf32>
    %cst_5 = arith.constant 0.000000e+00 : f32
    %15 = vector.broadcast %cst_5 : f32 to vector<2x1x10x8xf32>
    %16 = tpu.concatenate %15, %14, %15 in 1 : vector<2x1x10x8xf32>, vector<2x8x10x8xf32>, vector<2x1x10x8xf32> -> vector<2x10x10x8xf32>
    %17 = vector.extract_strided_slice %16 {offsets = [0, 0, 0, 0], sizes = [2, 8, 8, 8], strides = [1, 1, 1, 1]} : vector<2x10x10x8xf32> to vector<2x8x8x8xf32>
    %18 = vector.extract_strided_slice %16 {offsets = [0, 0, 1, 0], sizes = [2, 8, 8, 8], strides = [1, 1, 1, 1]} : vector<2x10x10x8xf32> to vector<2x8x8x8xf32>
    %19 = vector.extract_strided_slice %16 {offsets = [0, 0, 2, 0], sizes = [2, 8, 8, 8], strides = [1, 1, 1, 1]} : vector<2x10x10x8xf32> to vector<2x8x8x8xf32>
    %20 = vector.extract_strided_slice %16 {offsets = [0, 1, 0, 0], sizes = [2, 8, 8, 8], strides = [1, 1, 1, 1]} : vector<2x10x10x8xf32> to vector<2x8x8x8xf32>
    %21 = vector.extract_strided_slice %16 {offsets = [0, 1, 1, 0], sizes = [2, 8, 8, 8], strides = [1, 1, 1, 1]} : vector<2x10x10x8xf32> to vector<2x8x8x8xf32>
    %22 = vector.extract_strided_slice %16 {offsets = [0, 1, 2, 0], sizes = [2, 8, 8, 8], strides = [1, 1, 1, 1]} : vector<2x10x10x8xf32> to vector<2x8x8x8xf32>
    %23 = vector.extract_strided_slice %16 {offsets = [0, 2, 0, 0], sizes = [2, 8, 8, 8], strides = [1, 1, 1, 1]} : vector<2x10x10x8xf32> to vector<2x8x8x8xf32>
    %24 = vector.extract_strided_slice %16 {offsets = [0, 2, 1, 0], sizes = [2, 8, 8, 8], strides = [1, 1, 1, 1]} : vector<2x10x10x8xf32> to vector<2x8x8x8xf32>
    %25 = vector.extract_strided_slice %16 {offsets = [0, 2, 2, 0], sizes = [2, 8, 8, 8], strides = [1, 1, 1, 1]} : vector<2x10x10x8xf32> to vector<2x8x8x8xf32>
    %26 = tpu.concatenate %17, %18, %19, %20, %21, %22, %23, %24, %25 in 3 : vector<2x8x8x8xf32>, vector<2x8x8x8xf32>, vector<2x8x8x8xf32>, vector<2x8x8x8xf32>, vector<2x8x8x8xf32>, vector<2x8x8x8xf32>, vector<2x8x8x8xf32>, vector<2x8x8x8xf32>, vector<2x8x8x8xf32> -> vector<2x8x8x72xf32>
    %27 = vector.shape_cast %26 : vector<2x8x8x72xf32> to vector<128x72xf32>
    %c0_6 = arith.constant 0 : index
    %c0_7 = arith.constant 0 : index
    %28 = vector.load %arg2[%c0_6, %c0_7] : memref<72x8xf32, #tpu.memory_space<vmem>>, vector<72x8xf32>
    %cst_8 = arith.constant dense<0.000000e+00> : vector<128x8xf32>
    %29 = tpu.matmul %27, %28, %cst_8 {dimension_numbers = #tpu.dot_dimension_numbers<[1], [0], [0], [1], [0, 0, 1, 1], [], []>} : vector<128x72xf32>, vector<72x8xf32>, vector<128x8xf32> -> vector<128x8xf32>
    %30 = vector.shape_cast %29 : vector<128x8xf32> to vector<2x64x8xf32>
    %cst_9 = arith.constant dense<0.000000e+00> : vector<2x8xf32>
    %31 = vector.multi_reduction <add>, %30, %cst_9 [1] : vector<2x64x8xf32> to vector<2x8xf32>
    %32 = vector.shape_cast %31 : vector<2x8xf32> to vector<2x1x8xf32>
    %cst_10 = arith.constant 6.400000e+01 : f32
    %33 = vector.broadcast %cst_10 : f32 to vector<2x1x8xf32>
    %34 = arith.divf %32, %33 : vector<2x1x8xf32>
    %35 = vector.broadcast %34 : vector<2x1x8xf32> to vector<2x64x8xf32>
    %36 = arith.subf %30, %35 : vector<2x64x8xf32>
    %37 = arith.mulf %36, %36 : vector<2x64x8xf32>
    %cst_11 = arith.constant dense<0.000000e+00> : vector<2x8xf32>
    %38 = vector.multi_reduction <add>, %37, %cst_11 [1] : vector<2x64x8xf32> to vector<2x8xf32>
    %39 = vector.shape_cast %38 : vector<2x8xf32> to vector<2x1x8xf32>
    %cst_12 = arith.constant 6.400000e+01 : f32
    %40 = vector.broadcast %cst_12 : f32 to vector<2x1x8xf32>
    %41 = arith.divf %39, %40 : vector<2x1x8xf32>
    %42 = vector.broadcast %34 : vector<2x1x8xf32> to vector<2x64x8xf32>
    %43 = arith.subf %30, %42 : vector<2x64x8xf32>
    %cst_13 = arith.constant 9.99999974E-6 : f32
    %44 = vector.broadcast %cst_13 : f32 to vector<2x1x8xf32>
    %45 = arith.addf %41, %44 : vector<2x1x8xf32>
    %46 = math.rsqrt %45 : vector<2x1x8xf32>
    %47 = vector.broadcast %46 : vector<2x1x8xf32> to vector<2x64x8xf32>
    %48 = arith.mulf %43, %47 : vector<2x64x8xf32>
    %49 = vector.shape_cast %48 : vector<2x64x8xf32> to vector<2x8x8x8xf32>
    %cst_14 = arith.constant 0.000000e+00 : f32
    %50 = vector.broadcast %cst_14 : f32 to vector<2x8x1x8xf32>
    %51 = tpu.concatenate %50, %49, %50 in 2 : vector<2x8x1x8xf32>, vector<2x8x8x8xf32>, vector<2x8x1x8xf32> -> vector<2x8x10x8xf32>
    %cst_15 = arith.constant 0.000000e+00 : f32
    %52 = vector.broadcast %cst_15 : f32 to vector<2x1x10x8xf32>
    %53 = tpu.concatenate %52, %51, %52 in 1 : vector<2x1x10x8xf32>, vector<2x8x10x8xf32>, vector<2x1x10x8xf32> -> vector<2x10x10x8xf32>
    %54 = vector.extract_strided_slice %53 {offsets = [0, 0, 0, 0], sizes = [2, 8, 8, 8], strides = [1, 1, 1, 1]} : vector<2x10x10x8xf32> to vector<2x8x8x8xf32>
    %55 = vector.extract_strided_slice %53 {offsets = [0, 0, 1, 0], sizes = [2, 8, 8, 8], strides = [1, 1, 1, 1]} : vector<2x10x10x8xf32> to vector<2x8x8x8xf32>
    %56 = vector.extract_strided_slice %53 {offsets = [0, 0, 2, 0], sizes = [2, 8, 8, 8], strides = [1, 1, 1, 1]} : vector<2x10x10x8xf32> to vector<2x8x8x8xf32>
    %57 = vector.extract_strided_slice %53 {offsets = [0, 1, 0, 0], sizes = [2, 8, 8, 8], strides = [1, 1, 1, 1]} : vector<2x10x10x8xf32> to vector<2x8x8x8xf32>
    %58 = vector.extract_strided_slice %53 {offsets = [0, 1, 1, 0], sizes = [2, 8, 8, 8], strides = [1, 1, 1, 1]} : vector<2x10x10x8xf32> to vector<2x8x8x8xf32>
    %59 = vector.extract_strided_slice %53 {offsets = [0, 1, 2, 0], sizes = [2, 8, 8, 8], strides = [1, 1, 1, 1]} : vector<2x10x10x8xf32> to vector<2x8x8x8xf32>
    %60 = vector.extract_strided_slice %53 {offsets = [0, 2, 0, 0], sizes = [2, 8, 8, 8], strides = [1, 1, 1, 1]} : vector<2x10x10x8xf32> to vector<2x8x8x8xf32>
    %61 = vector.extract_strided_slice %53 {offsets = [0, 2, 1, 0], sizes = [2, 8, 8, 8], strides = [1, 1, 1, 1]} : vector<2x10x10x8xf32> to vector<2x8x8x8xf32>
    %62 = vector.extract_strided_slice %53 {offsets = [0, 2, 2, 0], sizes = [2, 8, 8, 8], strides = [1, 1, 1, 1]} : vector<2x10x10x8xf32> to vector<2x8x8x8xf32>
    %63 = tpu.concatenate %54, %55, %56, %57, %58, %59, %60, %61, %62 in 3 : vector<2x8x8x8xf32>, vector<2x8x8x8xf32>, vector<2x8x8x8xf32>, vector<2x8x8x8xf32>, vector<2x8x8x8xf32>, vector<2x8x8x8xf32>, vector<2x8x8x8xf32>, vector<2x8x8x8xf32>, vector<2x8x8x8xf32> -> vector<2x8x8x72xf32>
    %64 = vector.shape_cast %63 : vector<2x8x8x72xf32> to vector<128x72xf32>
    %c0_16 = arith.constant 0 : index
    %c0_17 = arith.constant 0 : index
    %65 = vector.load %arg3[%c0_16, %c0_17] : memref<72x8xf32, #tpu.memory_space<vmem>>, vector<72x8xf32>
    %cst_18 = arith.constant dense<0.000000e+00> : vector<128x8xf32>
    %66 = tpu.matmul %64, %65, %cst_18 {dimension_numbers = #tpu.dot_dimension_numbers<[1], [0], [0], [1], [0, 0, 1, 1], [], []>} : vector<128x72xf32>, vector<72x8xf32>, vector<128x8xf32> -> vector<128x8xf32>
    %67 = vector.shape_cast %66 : vector<128x8xf32> to vector<2x64x8xf32>
    %cst_19 = arith.constant dense<0.000000e+00> : vector<2x8xf32>
    %68 = vector.multi_reduction <add>, %67, %cst_19 [1] : vector<2x64x8xf32> to vector<2x8xf32>
    %69 = vector.shape_cast %68 : vector<2x8xf32> to vector<2x1x8xf32>
    %cst_20 = arith.constant 6.400000e+01 : f32
    %70 = vector.broadcast %cst_20 : f32 to vector<2x1x8xf32>
    %71 = arith.divf %69, %70 : vector<2x1x8xf32>
    %72 = vector.broadcast %71 : vector<2x1x8xf32> to vector<2x64x8xf32>
    %73 = arith.subf %67, %72 : vector<2x64x8xf32>
    %74 = arith.mulf %73, %73 : vector<2x64x8xf32>
    %cst_21 = arith.constant dense<0.000000e+00> : vector<2x8xf32>
    %75 = vector.multi_reduction <add>, %74, %cst_21 [1] : vector<2x64x8xf32> to vector<2x8xf32>
    %76 = vector.shape_cast %75 : vector<2x8xf32> to vector<2x1x8xf32>
    %cst_22 = arith.constant 6.400000e+01 : f32
    %77 = vector.broadcast %cst_22 : f32 to vector<2x1x8xf32>
    %78 = arith.divf %76, %77 : vector<2x1x8xf32>
    %79 = vector.broadcast %71 : vector<2x1x8xf32> to vector<2x64x8xf32>
    %80 = arith.subf %67, %79 : vector<2x64x8xf32>
    %cst_23 = arith.constant 9.99999974E-6 : f32
    %81 = vector.broadcast %cst_23 : f32 to vector<2x1x8xf32>
    %82 = arith.addf %78, %81 : vector<2x1x8xf32>
    %83 = math.rsqrt %82 : vector<2x1x8xf32>
    %84 = vector.broadcast %83 : vector<2x1x8xf32> to vector<2x64x8xf32>
    %85 = arith.mulf %80, %84 : vector<2x64x8xf32>
    %86 = tpu.transpose %85, [0, 2, 1] : vector<2x64x8xf32> -> vector<2x8x64xf32>
    %c0_24 = arith.constant 0 : index
    %c0_25 = arith.constant 0 : index
    %c0_26 = arith.constant 0 : index
    %87 = vector.load %arg4[%c0_24, %c0_25, %c0_26] : memref<2x8x64xf32, #tpu.memory_space<vmem>>, vector<2x8x64xf32>
    tpu.vector_store %arg4[%c0_24, %c0_25, %c0_26], %86 {strides = array<i32>} : memref<2x8x64xf32, #tpu.memory_space<vmem>>, vector<2x8x64xf32>,
    return
  }
  func.func @transform_0(%arg0: i32) -> (i32, i32, i32, i32) {
    %c0_i32 = arith.constant 0 : i32
    %c0_i32_0 = arith.constant 0 : i32
    %c0_i32_1 = arith.constant 0 : i32
    %c0_i32_2 = arith.constant 0 : i32
    return %arg0, %c0_i32, %c0_i32_0, %c0_i32_1 : i32, i32, i32, i32
  }
  func.func @transform_1(%arg0: i32) -> (i32, i32) {
    %c0_i32 = arith.constant 0 : i32
    %c0_i32_0 = arith.constant 0 : i32
    %c0_i32_1 = arith.constant 0 : i32
    return %c0_i32, %c0_i32_0 : i32, i32
  }
  func.func @transform_2(%arg0: i32) -> (i32, i32) {
    %c0_i32 = arith.constant 0 : i32
    %c0_i32_0 = arith.constant 0 : i32
    %c0_i32_1 = arith.constant 0 : i32
    return %c0_i32, %c0_i32_0 : i32, i32
  }
  func.func @transform_3(%arg0: i32) -> (i32, i32, i32) {
    %c0_i32 = arith.constant 0 : i32
    %c0_i32_0 = arith.constant 0 : i32
    %c0_i32_1 = arith.constant 0 : i32
    return %arg0, %c0_i32, %c0_i32_0 : i32, i32, i32
  }
}

</mosaic_0001>

<llo_original>
// kernel: tpu_custom_call.1
$region0: #{tpu_custom_call.1}
  #allocation0 [shape = 'u32[]', space=smem, size = 0x4, offset = 0x4, fixed_abs, tag = 'smem constant byte address 0x4 - core index']
  #allocation1 [shape = 'u32[144,128]{1,0:T(1,128)}', space=vmem, size = 0x12000, scoped, tag = 'internal scratch']
  %s0 = inlined_call_operand.hbm [shape: f32[2,16,8,16], index: 0, kind: input, shape index: {}]
  %s1 = inlined_call_operand.vmem [shape: f32[72,8], index: 1, kind: input, shape index: {}]
  %s2 = inlined_call_operand.vmem [shape: f32[72,8], index: 2, kind: input, shape index: {}]
  %s3 = inlined_call_operand.hbm [shape: f32[2,8,64], index: 3, kind: output, shape index: {}]
  %s4 = sld [smem:[#allocation0]]
  $region26: #{tpu_custom_call.1} parent=0
    _
  %s6 = ssub.s32 1, %s4
  %s7 = scalar_select 0, %s6, %s4
  $region1: #{tpu_custom_call.1} parent=0
    #allocation2 [shape = 'u8[131072]{0}', space=vmem, size = 0x20000, scoped, tag = 'input window, operand 0, single buffered']
    #allocation3 [shape = 's32[1]{0}', space=sflag, size = 0x4, scoped, tag = 'scoped memory for tpu_custom_call.1']
    #allocation4 [shape = 's32[1]{0}', space=sflag, size = 0x4, scoped, tag = 'scoped memory for tpu_custom_call.1']
    #allocation5 [shape = 'u8[8192]{0}', space=vmem, size = 0x2000, scoped, tag = 'output window, operand 0, single buffered']
    %8 = vsyncpa [#allocation3], 0
    %9 = vsyncpa [#allocation4], 0
    // Predicated region
    $region2: #{tpu_custom_call.1} parent=1 // pred_check
      _
    $region3: #{tpu_custom_call.1} parent=1 // pred_check_branch
      %11 = sbr.rel (0) target = $region5
    $region4: #{tpu_custom_call.1} parent=1 // pred_region
      %s13 = ssub.s32 4096, 4096
      %14 = vsyncadd [#allocation3], %s13
      %s15 = sshll.u32 [#allocation2], 4
      %s16 = int_to_ptr.vmem [resolvable:$true] %s15
      %21 = dma.hbm_to_vmem [thread:$0]  %s0, 4096, %s16, [#allocation3], 128, 128, 8
    $region5: #{tpu_custom_call.1} parent=1 // pred_fallthru
      _
    // Predicated region
    $region6: #{tpu_custom_call.1} parent=1 // pred_check
      _
    $region7: #{tpu_custom_call.1} parent=1 // pred_check_branch
      %23 = sbr.rel (0) target = $region9
    $region8: #{tpu_custom_call.1} parent=1 // pred_region
      _
    $region9: #{tpu_custom_call.1} parent=1 // pred_fallthru
      _
    // Predicated region
    $region10: #{tpu_custom_call.1} parent=1 // pred_check
      _
    $region11: #{tpu_custom_call.1} parent=1 // pred_check_branch
      %25 = sbr.rel (0) target = $region13
    $region12: #{tpu_custom_call.1} parent=1 // pred_region
      _
    $region13: #{tpu_custom_call.1} parent=1 // pred_fallthru
      _
    // Predicated region
    $region14: #{tpu_custom_call.1} parent=1 // pred_check
      _
    $region15: #{tpu_custom_call.1} parent=1 // pred_check_branch
      %27 = sbr.rel (0) target = $region17
    $region16: #{tpu_custom_call.1} parent=1 // pred_region
      %28 = dma.done [#allocation3], 4096
    $region17: #{tpu_custom_call.1} parent=1 // pred_fallthru
      _
    %v29 = vld [vmem:[#allocation2] sm:$0xff]
    %v30 = vld [vmem:[#allocation2 + $0x8] sm:$0xff]
    %v31 = vld [vmem:[#allocation2 + $0x10] sm:$0xff]
    %v32 = vld [vmem:[#allocation2 + $0x18] sm:$0xff]
    %v33 = vld [vmem:[#allocation2 + $0x20] sm:$0xff]
    %v34 = vld [vmem:[#allocation2 + $0x28] sm:$0xff]
    %v35 = vld [vmem:[#allocation2 + $0x30] sm:$0xff]
    %v36 = vld [vmem:[#allocation2 + $0x38] sm:$0xff]
    %v37 = vld [vmem:[#allocation2 + $0x40] sm:$0xff]
    %v38 = vld [vmem:[#allocation2 + $0x48] sm:$0xff]
    %v39 = vld [vmem:[#allocation2 + $0x50] sm:$0xff]
    %v40 = vld [vmem:[#allocation2 + $0x58] sm:$0xff]
    %v41 = vld [vmem:[#allocation2 + $0x60] sm:$0xff]
    %v42 = vld [vmem:[#allocation2 + $0x68] sm:$0xff]
    %v43 = vld [vmem:[#allocation2 + $0x70] sm:$0xff]
    %v44 = vld [vmem:[#allocation2 + $0x78] sm:$0xff]
    %v45 = vld [vmem:[#allocation2 + $0x80] sm:$0xff]
    %v46 = vld [vmem:[#allocation2 + $0x88] sm:$0xff]
    %v47 = vld [vmem:[#allocation2 + $0x90] sm:$0xff]
    %v48 = vld [vmem:[#allocation2 + $0x98] sm:$0xff]
    %v49 = vld [vmem:[#allocation2 + $0xa0] sm:$0xff]
    %v50 = vld [vmem:[#allocation2 + $0xa8] sm:$0xff]
    %v51 = vld [vmem:[#allocation2 + $0xb0] sm:$0xff]
    %v52 = vld [vmem:[#allocation2 + $0xb8] sm:$0xff]
    %v53 = vld [vmem:[#allocation2 + $0xc0] sm:$0xff]
    %v54 = vld [vmem:[#allocation2 + $0xc8] sm:$0xff]
    %v55 = vld [vmem:[#allocation2 + $0xd0] sm:$0xff]
    %v56 = vld [vmem:[#allocation2 + $0xd8] sm:$0xff]
    %v57 = vld [vmem:[#allocation2 + $0xe0] sm:$0xff]
    %v58 = vld [vmem:[#allocation2 + $0xe8] sm:$0xff]
    %v59 = vld [vmem:[#allocation2 + $0xf0] sm:$0xff]
    %v60 = vld [vmem:[#allocation2 + $0xf8] sm:$0xff]
    %93 = vrot.lane.b32.xlu0 %v29, 120
    %v94 = vpop.permute.xlu0 %93
    %95 = vrot.lane.b32.xlu0 %v30, 120
    %v96 = vpop.permute.xlu0 %95
    %97 = vrot.lane.b32.xlu0 %v31, 120
    %v98 = vpop.permute.xlu0 %97
    %99 = vrot.lane.b32.xlu0 %v32, 120
    %v100 = vpop.permute.xlu0 %99
    %101 = vrot.lane.b32.xlu0 %v33, 120
    %v102 = vpop.permute.xlu0 %101
    %103 = vrot.lane.b32.xlu0 %v34, 120
    %v104 = vpop.permute.xlu0 %103
    %105 = vrot.lane.b32.xlu0 %v35, 120
    %v106 = vpop.permute.xlu0 %105
    %107 = vrot.lane.b32.xlu0 %v36, 120
    %v108 = vpop.permute.xlu0 %107
    %109 = vrot.lane.b32.xlu0 %v37, 120
    %v110 = vpop.permute.xlu0 %109
    %111 = vrot.lane.b32.xlu0 %v38, 120
    %v112 = vpop.permute.xlu0 %111
    %113 = vrot.lane.b32.xlu0 %v39, 120
    %v114 = vpop.permute.xlu0 %113
    %115 = vrot.lane.b32.xlu0 %v40, 120
    %v116 = vpop.permute.xlu0 %115
    %117 = vrot.lane.b32.xlu0 %v41, 120
    %v118 = vpop.permute.xlu0 %117
    %119 = vrot.lane.b32.xlu0 %v42, 120
    %v120 = vpop.permute.xlu0 %119
    %121 = vrot.lane.b32.xlu0 %v43, 120
    %v122 = vpop.permute.xlu0 %121
    %123 = vrot.lane.b32.xlu0 %v44, 120
    %v124 = vpop.permute.xlu0 %123
    %125 = vrot.lane.b32.xlu0 %v45, 120
    %v126 = vpop.permute.xlu0 %125
    %127 = vrot.lane.b32.xlu0 %v46, 120
    %v128 = vpop.permute.xlu0 %127
    %129 = vrot.lane.b32.xlu0 %v47, 120
    %v130 = vpop.permute.xlu0 %129
    %131 = vrot.lane.b32.xlu0 %v48, 120
    %v132 = vpop.permute.xlu0 %131
    %133 = vrot.lane.b32.xlu0 %v49, 120
    %v134 = vpop.permute.xlu0 %133
    %135 = vrot.lane.b32.xlu0 %v50, 120
    %v136 = vpop.permute.xlu0 %135
    %137 = vrot.lane.b32.xlu0 %v51, 120
    %v138 = vpop.permute.xlu0 %137
    %139 = vrot.lane.b32.xlu0 %v52, 120
    %v140 = vpop.permute.xlu0 %139
    %141 = vrot.lane.b32.xlu0 %v53, 120
    %v142 = vpop.permute.xlu0 %141
    %143 = vrot.lane.b32.xlu0 %v54, 120
    %v144 = vpop.permute.xlu0 %143
    %145 = vrot.lane.b32.xlu0 %v55, 120
    %v146 = vpop.permute.xlu0 %145
    %147 = vrot.lane.b32.xlu0 %v56, 120
    %v148 = vpop.permute.xlu0 %147
    %149 = vrot.lane.b32.xlu0 %v57, 120
    %v150 = vpop.permute.xlu0 %149
    %151 = vrot.lane.b32.xlu0 %v58, 120
    %v152 = vpop.permute.xlu0 %151
    %153 = vrot.lane.b32.xlu0 %v59, 120
    %v154 = vpop.permute.xlu0 %153
    %155 = vrot.lane.b32.xlu0 %v60, 120
    %v156 = vpop.permute.xlu0 %155
    %v189 = vmax.f32 %v29, %v94
    %v190 = vmax.f32 %v30, %v96
    %v191 = vmax.f32 %v31, %v98
    %v192 = vmax.f32 %v32, %v100
    %v193 = vmax.f32 %v33, %v102
    %v194 = vmax.f32 %v34, %v104
    %v195 = vmax.f32 %v35, %v106
    %v196 = vmax.f32 %v36, %v108
    %v197 = vmax.f32 %v37, %v110
    %v198 = vmax.f32 %v38, %v112
    %v199 = vmax.f32 %v39, %v114
    %v200 = vmax.f32 %v40, %v116
    %v201 = vmax.f32 %v41, %v118
    %v202 = vmax.f32 %v42, %v120
    %v203 = vmax.f32 %v43, %v122
    %v204 = vmax.f32 %v44, %v124
    %v205 = vmax.f32 %v45, %v126
    %v206 = vmax.f32 %v46, %v128
    %v207 = vmax.f32 %v47, %v130
    %v208 = vmax.f32 %v48, %v132
    %v209 = vmax.f32 %v49, %v134
    %v210 = vmax.f32 %v50, %v136
    %v211 = vmax.f32 %v51, %v138
    %v212 = vmax.f32 %v52, %v140
    %v213 = vmax.f32 %v53, %v142
    %v214 = vmax.f32 %v54, %v144
    %v215 = vmax.f32 %v55, %v146
    %v216 = vmax.f32 %v56, %v148
    %v217 = vmax.f32 %v57, %v150
    %v218 = vmax.f32 %v58, %v152
    %v219 = vmax.f32 %v59, %v154
    %v220 = vmax.f32 %v60, %v156
    %v221 = vmax.f32 %v189, %v190
    %v222 = vmax.f32 %v191, %v192
    %v223 = vmax.f32 %v193, %v194
    %v224 = vmax.f32 %v195, %v196
    %v225 = vmax.f32 %v197, %v198
    %v226 = vmax.f32 %v199, %v200
    %v227 = vmax.f32 %v201, %v202
    %v228 = vmax.f32 %v203, %v204
    %v229 = vmax.f32 %v205, %v206
    %v230 = vmax.f32 %v207, %v208
    %v231 = vmax.f32 %v209, %v210
    %v232 = vmax.f32 %v211, %v212
    %v233 = vmax.f32 %v213, %v214
    %v234 = vmax.f32 %v215, %v216
    %v235 = vmax.f32 %v217, %v218
    %v236 = vmax.f32 %v219, %v220
    %vm237 = vcmp.gt.f32.partialorder %v221, 0.0
    %vm238 = vcmp.gt.f32.partialorder %v222, 0.0
    %vm239 = vcmp.gt.f32.partialorder %v223, 0.0
    %vm240 = vcmp.gt.f32.partialorder %v224, 0.0
    %vm241 = vcmp.gt.f32.partialorder %v225, 0.0
    %vm242 = vcmp.gt.f32.partialorder %v226, 0.0
    %vm243 = vcmp.gt.f32.partialorder %v227, 0.0
    %vm244 = vcmp.gt.f32.partialorder %v228, 0.0
    %vm245 = vcmp.gt.f32.partialorder %v229, 0.0
    %vm246 = vcmp.gt.f32.partialorder %v230, 0.0
    %vm247 = vcmp.gt.f32.partialorder %v231, 0.0
    %vm248 = vcmp.gt.f32.partialorder %v232, 0.0
    %vm249 = vcmp.gt.f32.partialorder %v233, 0.0
    %vm250 = vcmp.gt.f32.partialorder %v234, 0.0
    %vm251 = vcmp.gt.f32.partialorder %v235, 0.0
    %vm252 = vcmp.gt.f32.partialorder %v236, 0.0
    %v253 = vmul.f32 %v221, 0.01
    %v254 = vmul.f32 %v222, 0.01
    %v255 = vmul.f32 %v223, 0.01
    %v256 = vmul.f32 %v224, 0.01
    %v257 = vmul.f32 %v225, 0.01
    %v258 = vmul.f32 %v226, 0.01
    %v259 = vmul.f32 %v227, 0.01
    %v260 = vmul.f32 %v228, 0.01
    %v261 = vmul.f32 %v229, 0.01
    %v262 = vmul.f32 %v230, 0.01
    %v263 = vmul.f32 %v231, 0.01
    %v264 = vmul.f32 %v232, 0.01
    %v265 = vmul.f32 %v233, 0.01
    %v266 = vmul.f32 %v234, 0.01
    %v267 = vmul.f32 %v235, 0.01
    %v268 = vmul.f32 %v236, 0.01
    %v269 = vsel %vm237, %v221, %v253
    %v270 = vsel %vm238, %v222, %v254
    %v271 = vsel %vm239, %v223, %v255
    %v272 = vsel %vm240, %v224, %v256
    %v273 = vsel %vm241, %v225, %v257
    %v274 = vsel %vm242, %v226, %v258
    %v275 = vsel %vm243, %v227, %v259
    %v276 = vsel %vm244, %v228, %v260
    %v277 = vsel %vm245, %v229, %v261
    %v278 = vsel %vm246, %v230, %v262
    %v279 = vsel %vm247, %v231, %v263
    %v280 = vsel %vm248, %v232, %v264
    %v281 = vsel %vm249, %v233, %v265
    %v282 = vsel %vm250, %v234, %v266
    %v283 = vsel %vm251, %v235, %v267
    %v284 = vsel %vm252, %v236, %v268
    %v301 = vrot.slane %v269, 7
    %v302 = vrot.slane %v270, 7
    %v303 = vrot.slane %v271, 7
    %v304 = vrot.slane %v272, 7
    %v305 = vrot.slane %v273, 7
    %v306 = vrot.slane %v274, 7
    %v307 = vrot.slane %v275, 7
    %v308 = vrot.slane %v276, 7
    %v309 = vrot.slane %v277, 7
    %v310 = vrot.slane %v278, 7
    %v311 = vrot.slane %v279, 7
    %v312 = vrot.slane %v280, 7
    %v313 = vrot.slane %v281, 7
    %v314 = vrot.slane %v282, 7
    %v315 = vrot.slane %v283, 7
    %v316 = vrot.slane %v284, 7
    %vm333 = vcmask 1040384
    %v334 = vsel %vm333, 0.0, %v301
    %v335 = vsel %vm333, 0.0, %v302
    %v336 = vsel %vm333, 0.0, %v303
    %v337 = vsel %vm333, 0.0, %v304
    %v338 = vsel %vm333, 0.0, %v305
    %v339 = vsel %vm333, 0.0, %v306
    %v340 = vsel %vm333, 0.0, %v307
    %v341 = vsel %vm333, 0.0, %v308
    %v342 = vsel %vm333, 0.0, %v309
    %v343 = vsel %vm333, 0.0, %v310
    %v344 = vsel %vm333, 0.0, %v311
    %v345 = vsel %vm333, 0.0, %v312
    %v346 = vsel %vm333, 0.0, %v313
    %v347 = vsel %vm333, 0.0, %v314
    %v348 = vsel %vm333, 0.0, %v315
    %v349 = vsel %vm333, 0.0, %v316
    %v350 = vsel %vm333, %v301, 0.0
    %v351 = vsel %vm333, %v302, 0.0
    %v352 = vsel %vm333, %v303, 0.0
    %v353 = vsel %vm333, %v304, 0.0
    %v354 = vsel %vm333, %v305, 0.0
    %v355 = vsel %vm333, %v306, 0.0
    %v356 = vsel %vm333, %v307, 0.0
    %v357 = vsel %vm333, %v308, 0.0
    %v358 = vsel %vm333, %v309, 0.0
    %v359 = vsel %vm333, %v310, 0.0
    %v360 = vsel %vm333, %v311, 0.0
    %v361 = vsel %vm333, %v312, 0.0
    %v362 = vsel %vm333, %v313, 0.0
    %v363 = vsel %vm333, %v314, 0.0
    %v364 = vsel %vm333, %v315, 0.0
    %v365 = vsel %vm333, %v316, 0.0
    %vm395 = vcmask 1046528
    %v396 = vrot.slane 0.0, 1
    %v397 = vsel %vm395, %v396, %v396
    %v398 = vrot.slane %v334, 1
    %v399 = vrot.slane %v350, 1
    %v400 = vsel %vm395, %v398, %v399
    %v401 = vrot.slane %v335, 1
    %v402 = vrot.slane %v351, 1
    %v403 = vsel %vm395, %v401, %v402
    %v404 = vrot.slane %v336, 1
    %v405 = vrot.slane %v352, 1
    %v406 = vsel %vm395, %v404, %v405
    %v407 = vrot.slane %v337, 1
    %v408 = vrot.slane %v353, 1
    %v409 = vsel %vm395, %v407, %v408
    %v410 = vrot.slane %v338, 1
    %v411 = vrot.slane %v354, 1
    %v412 = vsel %vm395, %v410, %v411
    %v413 = vrot.slane %v339, 1
    %v414 = vrot.slane %v355, 1
    %v415 = vsel %vm395, %v413, %v414
    %v416 = vrot.slane %v340, 1
    %v417 = vrot.slane %v356, 1
    %v418 = vsel %vm395, %v416, %v417
    %v419 = vrot.slane %v342, 1
    %v420 = vrot.slane %v358, 1
    %v421 = vsel %vm395, %v419, %v420
    %v422 = vrot.slane %v343, 1
    %v423 = vrot.slane %v359, 1
    %v424 = vsel %vm395, %v422, %v423
    %v425 = vrot.slane %v344, 1
    %v426 = vrot.slane %v360, 1
    %v427 = vsel %vm395, %v425, %v426
    %v428 = vrot.slane %v345, 1
    %v429 = vrot.slane %v361, 1
    %v430 = vsel %vm395, %v428, %v429
    %v431 = vrot.slane %v346, 1
    %v432 = vrot.slane %v362, 1
    %v433 = vsel %vm395, %v431, %v432
    %v434 = vrot.slane %v347, 1
    %v435 = vrot.slane %v363, 1
    %v436 = vsel %vm395, %v434, %v435
    %v437 = vrot.slane %v348, 1
    %v438 = vrot.slane %v364, 1
    %v439 = vsel %vm395, %v437, %v438
    %440 = vrot.lane.b32.xlu0 %v397, 8
    %v441 = vpop.permute.xlu0 %440
    %442 = vrot.lane.b32.xlu0 %v400, 8
    %v443 = vpop.permute.xlu0 %442
    %444 = vrot.lane.b32.xlu0 %v403, 8
    %v445 = vpop.permute.xlu0 %444
    %446 = vrot.lane.b32.xlu0 %v406, 8
    %v447 = vpop.permute.xlu0 %446
    %448 = vrot.lane.b32.xlu0 %v409, 8
    %v449 = vpop.permute.xlu0 %448
    %450 = vrot.lane.b32.xlu0 %v412, 8
    %v451 = vpop.permute.xlu0 %450
    %452 = vrot.lane.b32.xlu0 %v415, 8
    %v453 = vpop.permute.xlu0 %452
    %454 = vrot.lane.b32.xlu0 %v418, 8
    %v455 = vpop.permute.xlu0 %454
    %456 = vrot.lane.b32.xlu0 %v421, 8
    %v457 = vpop.permute.xlu0 %456
    %458 = vrot.lane.b32.xlu0 %v424, 8
    %v459 = vpop.permute.xlu0 %458
    %460 = vrot.lane.b32.xlu0 %v427, 8
    %v461 = vpop.permute.xlu0 %460
    %462 = vrot.lane.b32.xlu0 %v430, 8
    %v463 = vpop.permute.xlu0 %462
    %464 = vrot.lane.b32.xlu0 %v433, 8
    %v465 = vpop.permute.xlu0 %464
    %466 = vrot.lane.b32.xlu0 %v436, 8
    %v467 = vpop.permute.xlu0 %466
    %468 = vrot.lane.b32.xlu0 %v439, 8
    %v469 = vpop.permute.xlu0 %468
    %vm485 = vcmask 1045504
    %v486 = vrot.slane 0.0, 2
    %v487 = vsel %vm485, %v486, %v486
    %v488 = vrot.slane %v334, 2
    %v489 = vrot.slane %v350, 2
    %v490 = vsel %vm485, %v488, %v489
    %v491 = vrot.slane %v335, 2
    %v492 = vrot.slane %v351, 2
    %v493 = vsel %vm485, %v491, %v492
    %v494 = vrot.slane %v336, 2
    %v495 = vrot.slane %v352, 2
    %v496 = vsel %vm485, %v494, %v495
    %v497 = vrot.slane %v337, 2
    %v498 = vrot.slane %v353, 2
    %v499 = vsel %vm485, %v497, %v498
    %v500 = vrot.slane %v338, 2
    %v501 = vrot.slane %v354, 2
    %v502 = vsel %vm485, %v500, %v501
    %v503 = vrot.slane %v339, 2
    %v504 = vrot.slane %v355, 2
    %v505 = vsel %vm485, %v503, %v504
    %v506 = vrot.slane %v340, 2
    %v507 = vrot.slane %v356, 2
    %v508 = vsel %vm485, %v506, %v507
    %v509 = vrot.slane %v342, 2
    %v510 = vrot.slane %v358, 2
    %v511 = vsel %vm485, %v509, %v510
    %v512 = vrot.slane %v343, 2
    %v513 = vrot.slane %v359, 2
    %v514 = vsel %vm485, %v512, %v513
    %v515 = vrot.slane %v344, 2
    %v516 = vrot.slane %v360, 2
    %v517 = vsel %vm485, %v515, %v516
    %v518 = vrot.slane %v345, 2
    %v519 = vrot.slane %v361, 2
    %v520 = vsel %vm485, %v518, %v519
    %v521 = vrot.slane %v346, 2
    %v522 = vrot.slane %v362, 2
    %v523 = vsel %vm485, %v521, %v522
    %v524 = vrot.slane %v347, 2
    %v525 = vrot.slane %v363, 2
    %v526 = vsel %vm485, %v524, %v525
    %v527 = vrot.slane %v348, 2
    %v528 = vrot.slane %v364, 2
    %v529 = vsel %vm485, %v527, %v528
    %530 = vrot.lane.b32.xlu0 %v487, 16
    %v531 = vpop.permute.xlu0 %530
    %532 = vrot.lane.b32.xlu0 %v490, 16
    %v533 = vpop.permute.xlu0 %532
    %534 = vrot.lane.b32.xlu0 %v493, 16
    %v535 = vpop.permute.xlu0 %534
    %536 = vrot.lane.b32.xlu0 %v496, 16
    %v537 = vpop.permute.xlu0 %536
    %538 = vrot.lane.b32.xlu0 %v499, 16
    %v539 = vpop.permute.xlu0 %538
    %540 = vrot.lane.b32.xlu0 %v502, 16
    %v541 = vpop.permute.xlu0 %540
    %542 = vrot.lane.b32.xlu0 %v505, 16
    %v543 = vpop.permute.xlu0 %542
    %544 = vrot.lane.b32.xlu0 %v508, 16
    %v545 = vpop.permute.xlu0 %544
    %546 = vrot.lane.b32.xlu0 %v511, 16
    %v547 = vpop.permute.xlu0 %546
    %548 = vrot.lane.b32.xlu0 %v514, 16
    %v549 = vpop.permute.xlu0 %548
    %550 = vrot.lane.b32.xlu0 %v517, 16
    %v551 = vpop.permute.xlu0 %550
    %552 = vrot.lane.b32.xlu0 %v520, 16
    %v553 = vpop.permute.xlu0 %552
    %554 = vrot.lane.b32.xlu0 %v523, 16
    %v555 = vpop.permute.xlu0 %554
    %556 = vrot.lane.b32.xlu0 %v526, 16
    %v557 = vpop.permute.xlu0 %556
    %558 = vrot.lane.b32.xlu0 %v529, 16
    %v559 = vpop.permute.xlu0 %558
    %577 = vrot.lane.b32.xlu0 %v334, 24
    %v578 = vpop.permute.xlu0 %577
    %579 = vrot.lane.b32.xlu0 %v335, 24
    %v580 = vpop.permute.xlu0 %579
    %581 = vrot.lane.b32.xlu0 %v336, 24
    %v582 = vpop.permute.xlu0 %581
    %583 = vrot.lane.b32.xlu0 %v337, 24
    %v584 = vpop.permute.xlu0 %583
    %585 = vrot.lane.b32.xlu0 %v338, 24
    %v586 = vpop.permute.xlu0 %585
    %587 = vrot.lane.b32.xlu0 %v339, 24
    %v588 = vpop.permute.xlu0 %587
    %589 = vrot.lane.b32.xlu0 %v340, 24
    %v590 = vpop.permute.xlu0 %589
    %591 = vrot.lane.b32.xlu0 %v341, 24
    %v592 = vpop.permute.xlu0 %591
    %593 = vrot.lane.b32.xlu0 %v342, 24
    %v594 = vpop.permute.xlu0 %593
    %595 = vrot.lane.b32.xlu0 %v343, 24
    %v596 = vpop.permute.xlu0 %595
    %597 = vrot.lane.b32.xlu0 %v344, 24
    %v598 = vpop.permute.xlu0 %597
    %599 = vrot.lane.b32.xlu0 %v345, 24
    %v600 = vpop.permute.xlu0 %599
    %601 = vrot.lane.b32.xlu0 %v346, 24
    %v602 = vpop.permute.xlu0 %601
    %603 = vrot.lane.b32.xlu0 %v347, 24
    %v604 = vpop.permute.xlu0 %603
    %605 = vrot.lane.b32.xlu0 %v348, 24
    %v606 = vpop.permute.xlu0 %605
    %607 = vrot.lane.b32.xlu0 %v349, 24
    %v608 = vpop.permute.xlu0 %607
    %v627 = vrot.slane %v341, 1
    %v628 = vrot.slane %v357, 1
    %v629 = vsel %vm395, %v627, %v628
    %v630 = vrot.slane %v349, 1
    %v631 = vrot.slane %v365, 1
    %v632 = vsel %vm395, %v630, %v631
    %633 = vrot.lane.b32.xlu0 %v400, 32
    %v634 = vpop.permute.xlu0 %633
    %635 = vrot.lane.b32.xlu0 %v403, 32
    %v636 = vpop.permute.xlu0 %635
    %637 = vrot.lane.b32.xlu0 %v406, 32
    %v638 = vpop.permute.xlu0 %637
    %639 = vrot.lane.b32.xlu0 %v409, 32
    %v640 = vpop.permute.xlu0 %639
    %641 = vrot.lane.b32.xlu0 %v412, 32
    %v642 = vpop.permute.xlu0 %641
    %643 = vrot.lane.b32.xlu0 %v415, 32
    %v644 = vpop.permute.xlu0 %643
    %645 = vrot.lane.b32.xlu0 %v418, 32
    %v646 = vpop.permute.xlu0 %645
    %647 = vrot.lane.b32.xlu0 %v629, 32
    %v648 = vpop.permute.xlu0 %647
    %649 = vrot.lane.b32.xlu0 %v421, 32
    %v650 = vpop.permute.xlu0 %649
    %651 = vrot.lane.b32.xlu0 %v424, 32
    %v652 = vpop.permute.xlu0 %651
    %653 = vrot.lane.b32.xlu0 %v427, 32
    %v654 = vpop.permute.xlu0 %653
    %655 = vrot.lane.b32.xlu0 %v430, 32
    %v656 = vpop.permute.xlu0 %655
    %657 = vrot.lane.b32.xlu0 %v433, 32
    %v658 = vpop.permute.xlu0 %657
    %659 = vrot.lane.b32.xlu0 %v436, 32
    %v660 = vpop.permute.xlu0 %659
    %661 = vrot.lane.b32.xlu0 %v439, 32
    %v662 = vpop.permute.xlu0 %661
    %663 = vrot.lane.b32.xlu0 %v632, 32
    %v664 = vpop.permute.xlu0 %663
    %v681 = vrot.slane %v341, 2
    %v682 = vrot.slane %v357, 2
    %v683 = vsel %vm485, %v681, %v682
    %v684 = vrot.slane %v349, 2
    %v685 = vrot.slane %v365, 2
    %v686 = vsel %vm485, %v684, %v685
    %687 = vrot.lane.b32.xlu0 %v490, 40
    %v688 = vpop.permute.xlu0 %687
    %689 = vrot.lane.b32.xlu0 %v493, 40
    %v690 = vpop.permute.xlu0 %689
    %691 = vrot.lane.b32.xlu0 %v496, 40
    %v692 = vpop.permute.xlu0 %691
    %693 = vrot.lane.b32.xlu0 %v499, 40
    %v694 = vpop.permute.xlu0 %693
    %695 = vrot.lane.b32.xlu0 %v502, 40
    %v696 = vpop.permute.xlu0 %695
    %697 = vrot.lane.b32.xlu0 %v505, 40
    %v698 = vpop.permute.xlu0 %697
    %699 = vrot.lane.b32.xlu0 %v508, 40
    %v700 = vpop.permute.xlu0 %699
    %701 = vrot.lane.b32.xlu0 %v683, 40
    %v702 = vpop.permute.xlu0 %701
    %703 = vrot.lane.b32.xlu0 %v511, 40
    %v704 = vpop.permute.xlu0 %703
    %705 = vrot.lane.b32.xlu0 %v514, 40
    %v706 = vpop.permute.xlu0 %705
    %707 = vrot.lane.b32.xlu0 %v517, 40
    %v708 = vpop.permute.xlu0 %707
    %709 = vrot.lane.b32.xlu0 %v520, 40
    %v710 = vpop.permute.xlu0 %709
    %711 = vrot.lane.b32.xlu0 %v523, 40
    %v712 = vpop.permute.xlu0 %711
    %713 = vrot.lane.b32.xlu0 %v526, 40
    %v714 = vpop.permute.xlu0 %713
    %715 = vrot.lane.b32.xlu0 %v529, 40
    %v716 = vpop.permute.xlu0 %715
    %717 = vrot.lane.b32.xlu0 %v686, 40
    %v718 = vpop.permute.xlu0 %717
    %735 = vrot.lane.b32.xlu0 %v335, 48
    %v736 = vpop.permute.xlu0 %735
    %737 = vrot.lane.b32.xlu0 %v336, 48
    %v738 = vpop.permute.xlu0 %737
    %739 = vrot.lane.b32.xlu0 %v337, 48
    %v740 = vpop.permute.xlu0 %739
    %741 = vrot.lane.b32.xlu0 %v338, 48
    %v742 = vpop.permute.xlu0 %741
    %743 = vrot.lane.b32.xlu0 %v339, 48
    %v744 = vpop.permute.xlu0 %743
    %745 = vrot.lane.b32.xlu0 %v340, 48
    %v746 = vpop.permute.xlu0 %745
    %747 = vrot.lane.b32.xlu0 %v341, 48
    %v748 = vpop.permute.xlu0 %747
    %749 = vrot.lane.b32.xlu0 0.0, 48
    %v750 = vpop.permute.xlu0 %749
    %751 = vrot.lane.b32.xlu0 %v343, 48
    %v752 = vpop.permute.xlu0 %751
    %753 = vrot.lane.b32.xlu0 %v344, 48
    %v754 = vpop.permute.xlu0 %753
    %755 = vrot.lane.b32.xlu0 %v345, 48
    %v756 = vpop.permute.xlu0 %755
    %757 = vrot.lane.b32.xlu0 %v346, 48
    %v758 = vpop.permute.xlu0 %757
    %759 = vrot.lane.b32.xlu0 %v347, 48
    %v760 = vpop.permute.xlu0 %759
    %761 = vrot.lane.b32.xlu0 %v348, 48
    %v762 = vpop.permute.xlu0 %761
    %763 = vrot.lane.b32.xlu0 %v349, 48
    %v764 = vpop.permute.xlu0 %763
    %780 = vrot.lane.b32.xlu0 %v403, 56
    %v781 = vpop.permute.xlu0 %780
    %782 = vrot.lane.b32.xlu0 %v406, 56
    %v783 = vpop.permute.xlu0 %782
    %784 = vrot.lane.b32.xlu0 %v409, 56
    %v785 = vpop.permute.xlu0 %784
    %786 = vrot.lane.b32.xlu0 %v412, 56
    %v787 = vpop.permute.xlu0 %786
    %788 = vrot.lane.b32.xlu0 %v415, 56
    %v789 = vpop.permute.xlu0 %788
    %790 = vrot.lane.b32.xlu0 %v418, 56
    %v791 = vpop.permute.xlu0 %790
    %792 = vrot.lane.b32.xlu0 %v629, 56
    %v793 = vpop.permute.xlu0 %792
    %794 = vrot.lane.b32.xlu0 %v397, 56
    %v795 = vpop.permute.xlu0 %794
    %796 = vrot.lane.b32.xlu0 %v424, 56
    %v797 = vpop.permute.xlu0 %796
    %798 = vrot.lane.b32.xlu0 %v427, 56
    %v799 = vpop.permute.xlu0 %798
    %800 = vrot.lane.b32.xlu0 %v430, 56
    %v801 = vpop.permute.xlu0 %800
    %802 = vrot.lane.b32.xlu0 %v433, 56
    %v803 = vpop.permute.xlu0 %802
    %804 = vrot.lane.b32.xlu0 %v436, 56
    %v805 = vpop.permute.xlu0 %804
    %806 = vrot.lane.b32.xlu0 %v439, 56
    %v807 = vpop.permute.xlu0 %806
    %808 = vrot.lane.b32.xlu0 %v632, 56
    %v809 = vpop.permute.xlu0 %808
    %825 = vrot.lane.b32.xlu0 %v493, 64
    %v826 = vpop.permute.xlu0 %825
    %827 = vrot.lane.b32.xlu0 %v496, 64
    %v828 = vpop.permute.xlu0 %827
    %829 = vrot.lane.b32.xlu0 %v499, 64
    %v830 = vpop.permute.xlu0 %829
    %831 = vrot.lane.b32.xlu0 %v502, 64
    %v832 = vpop.permute.xlu0 %831
    %833 = vrot.lane.b32.xlu0 %v505, 64
    %v834 = vpop.permute.xlu0 %833
    %835 = vrot.lane.b32.xlu0 %v508, 64
    %v836 = vpop.permute.xlu0 %835
    %837 = vrot.lane.b32.xlu0 %v683, 64
    %v838 = vpop.permute.xlu0 %837
    %839 = vrot.lane.b32.xlu0 %v487, 64
    %v840 = vpop.permute.xlu0 %839
    %841 = vrot.lane.b32.xlu0 %v514, 64
    %v842 = vpop.permute.xlu0 %841
    %843 = vrot.lane.b32.xlu0 %v517, 64
    %v844 = vpop.permute.xlu0 %843
    %845 = vrot.lane.b32.xlu0 %v520, 64
    %v846 = vpop.permute.xlu0 %845
    %847 = vrot.lane.b32.xlu0 %v523, 64
    %v848 = vpop.permute.xlu0 %847
    %849 = vrot.lane.b32.xlu0 %v526, 64
    %v850 = vpop.permute.xlu0 %849
    %851 = vrot.lane.b32.xlu0 %v529, 64
    %v852 = vpop.permute.xlu0 %851
    %853 = vrot.lane.b32.xlu0 %v686, 64
    %v854 = vpop.permute.xlu0 %853
    %vm870 = vcmask 64512
    %v871 = vsel %vm870, 0.0, %v441
    %v872 = vsel %vm870, %v334, %v443
    %v873 = vsel %vm870, %v335, %v445
    %v874 = vsel %vm870, %v336, %v447
    %v875 = vsel %vm870, %v337, %v449
    %v876 = vsel %vm870, %v338, %v451
    %v877 = vsel %vm870, %v339, %v453
    %v878 = vsel %vm870, %v340, %v455
    %v879 = vsel %vm870, %v342, %v457
    %v880 = vsel %vm870, %v343, %v459
    %v881 = vsel %vm870, %v344, %v461
    %v882 = vsel %vm870, %v345, %v463
    %v883 = vsel %vm870, %v346, %v465
    %v884 = vsel %vm870, %v347, %v467
    %v885 = vsel %vm870, %v348, %v469
    %vm886 = vcmask 130048
    %v887 = vsel %vm886, %v871, %v531
    %v888 = vsel %vm886, %v872, %v533
    %v889 = vsel %vm886, %v873, %v535
    %v890 = vsel %vm886, %v874, %v537
    %v891 = vsel %vm886, %v875, %v539
    %v892 = vsel %vm886, %v876, %v541
    %v893 = vsel %vm886, %v877, %v543
    %v894 = vsel %vm886, %v878, %v545
    %v895 = vsel %vm886, %v879, %v547
    %v896 = vsel %vm886, %v880, %v549
    %v897 = vsel %vm886, %v881, %v551
    %v898 = vsel %vm886, %v882, %v553
    %v899 = vsel %vm886, %v883, %v555
    %v900 = vsel %vm886, %v884, %v557
    %v901 = vsel %vm886, %v885, %v559
    %vm902 = vcmask 195584
    %v903 = vsel %vm902, %v887, %v578
    %v904 = vsel %vm902, %v888, %v580
    %v905 = vsel %vm902, %v889, %v582
    %v906 = vsel %vm902, %v890, %v584
    %v907 = vsel %vm902, %v891, %v586
    %v908 = vsel %vm902, %v892, %v588
    %v909 = vsel %vm902, %v893, %v590
    %v910 = vsel %vm902, %v894, %v592
    %v911 = vsel %vm902, %v887, %v594
    %v912 = vsel %vm902, %v895, %v596
    %v913 = vsel %vm902, %v896, %v598
    %v914 = vsel %vm902, %v897, %v600
    %v915 = vsel %vm902, %v898, %v602
    %v916 = vsel %vm902, %v899, %v604
    %v917 = vsel %vm902, %v900, %v606
    %v918 = vsel %vm902, %v901, %v608
    %vm919 = vcmask 261120
    %v920 = vsel %vm919, %v903, %v634
    %v921 = vsel %vm919, %v904, %v636
    %v922 = vsel %vm919, %v905, %v638
    %v923 = vsel %vm919, %v906, %v640
    %v924 = vsel %vm919, %v907, %v642
    %v925 = vsel %vm919, %v908, %v644
    %v926 = vsel %vm919, %v909, %v646
    %v927 = vsel %vm919, %v910, %v648
    %v928 = vsel %vm919, %v911, %v650
    %v929 = vsel %vm919, %v912, %v652
    %v930 = vsel %vm919, %v913, %v654
    %v931 = vsel %vm919, %v914, %v656
    %v932 = vsel %vm919, %v915, %v658
    %v933 = vsel %vm919, %v916, %v660
    %v934 = vsel %vm919, %v917, %v662
    %v935 = vsel %vm919, %v918, %v664
    %vm936 = vcmask 326656
    %v937 = vsel %vm936, %v920, %v688
    %v938 = vsel %vm936, %v921, %v690
    %v939 = vsel %vm936, %v922, %v692
    %v940 = vsel %vm936, %v923, %v694
    %v941 = vsel %vm936, %v924, %v696
    %v942 = vsel %vm936, %v925, %v698
    %v943 = vsel %vm936, %v926, %v700
    %v944 = vsel %vm936, %v927, %v702
    %v945 = vsel %vm936, %v928, %v704
    %v946 = vsel %vm936, %v929, %v706
    %v947 = vsel %vm936, %v930, %v708
    %v948 = vsel %vm936, %v931, %v710
    %v949 = vsel %vm936, %v932, %v712
    %v950 = vsel %vm936, %v933, %v714
    %v951 = vsel %vm936, %v934, %v716
    %v952 = vsel %vm936, %v935, %v718
    %vm953 = vcmask 392192
    %v954 = vsel %vm953, %v937, %v736
    %v955 = vsel %vm953, %v938, %v738
    %v956 = vsel %vm953, %v939, %v740
    %v957 = vsel %vm953, %v940, %v742
    %v958 = vsel %vm953, %v941, %v744
    %v959 = vsel %vm953, %v942, %v746
    %v960 = vsel %vm953, %v943, %v748
    %v961 = vsel %vm953, %v944, %v750
    %v962 = vsel %vm953, %v945, %v752
    %v963 = vsel %vm953, %v946, %v754
    %v964 = vsel %vm953, %v947, %v756
    %v965 = vsel %vm953, %v948, %v758
    %v966 = vsel %vm953, %v949, %v760
    %v967 = vsel %vm953, %v950, %v762
    %v968 = vsel %vm953, %v951, %v764
    %v969 = vsel %vm953, %v952, %v750
    %vm970 = vcmask 457728
    %v971 = vsel %vm970, %v954, %v781
    %v972 = vsel %vm970, %v955, %v783
    %v973 = vsel %vm970, %v956, %v785
    %v974 = vsel %vm970, %v957, %v787
    %v975 = vsel %vm970, %v958, %v789
    %v976 = vsel %vm970, %v959, %v791
    %v977 = vsel %vm970, %v960, %v793
    %v978 = vsel %vm970, %v961, %v795
    %v979 = vsel %vm970, %v962, %v797
    %v980 = vsel %vm970, %v963, %v799
    %v981 = vsel %vm970, %v964, %v801
    %v982 = vsel %vm970, %v965, %v803
    %v983 = vsel %vm970, %v966, %v805
    %v984 = vsel %vm970, %v967, %v807
    %v985 = vsel %vm970, %v968, %v809
    %v986 = vsel %vm970, %v969, %v795
    %vm987 = vcmask 523264
    %v988 = vsel %vm987, %v971, %v826
    %v989 = vsel %vm987, %v972, %v828
    %v990 = vsel %vm987, %v973, %v830
    %v991 = vsel %vm987, %v974, %v832
    %v992 = vsel %vm987, %v975, %v834
    %v993 = vsel %vm987, %v976, %v836
    %v994 = vsel %vm987, %v977, %v838
    %v995 = vsel %vm987, %v978, %v840
    %v996 = vsel %vm987, %v979, %v842
    %v997 = vsel %vm987, %v980, %v844
    %v998 = vsel %vm987, %v981, %v846
    %v999 = vsel %vm987, %v982, %v848
    %v1000 = vsel %vm987, %v983, %v850
    %v1001 = vsel %vm987, %v984, %v852
    %v1002 = vsel %vm987, %v985, %v854
    %v1003 = vsel %vm987, %v986, %v840
    %v1004 = vld [vmem:[%s1] sm:$0xff]
    %v1005 = vld [vmem:[%s1 + $0x8] sm:$0xff]
    %v1006 = vld [vmem:[%s1 + $0x10] sm:$0xff]
    %v1007 = vld [vmem:[%s1 + $0x18] sm:$0xff]
    %v1008 = vld [vmem:[%s1 + $0x20] sm:$0xff]
    %v1009 = vld [vmem:[%s1 + $0x28] sm:$0xff]
    %v1010 = vld [vmem:[%s1 + $0x30] sm:$0xff]
    %v1011 = vld [vmem:[%s1 + $0x38] sm:$0xff]
    %v1012 = vld [vmem:[%s1 + $0x40] sm:$0xff]
    %vm1013 = vcmask 588800
    %v1015 = vsel %vm1013, %v988, 0
    %v1018 = vsel %vm1013, %v989, 0
    %v1021 = vsel %vm1013, %v990, 0
    %v1024 = vsel %vm1013, %v991, 0
    %v1027 = vsel %vm1013, %v992, 0
    %v1030 = vsel %vm1013, %v993, 0
    %v1033 = vsel %vm1013, %v994, 0
    %v1036 = vsel %vm1013, %v995, 0
    %v1039 = vsel %vm1013, %v996, 0
    %v1042 = vsel %vm1013, %v997, 0
    %v1045 = vsel %vm1013, %v998, 0
    %v1048 = vsel %vm1013, %v999, 0
    %v1051 = vsel %vm1013, %v1000, 0
    %v1054 = vsel %vm1013, %v1001, 0
    %v1057 = vsel %vm1013, %v1002, 0
    %v1060 = vsel %vm1013, %v1003, 0
    %1062 = vmatprep.subr.mxu0 0.0
    %1063 = vmatpush1.msra.mxu0 %v1004
    %1064 = vmatprep.subr.mxu0 0.0
    %1065 = vmatpush1.msra.mxu0 %v1005
    %1066 = vmatprep.subr.mxu0 0.0
    %1067 = vmatpush1.msra.mxu0 %v1006
    %1068 = vmatprep.subr.mxu0 0.0
    %1069 = vmatpush1.msra.mxu0 %v1007
    %1070 = vmatprep.subr.mxu0 0.0
    %1071 = vmatpush1.msra.mxu0 %v1008
    %1072 = vmatprep.subr.mxu0 0.0
    %1073 = vmatpush1.msra.mxu0 %v1009
    %1074 = vmatprep.subr.mxu0 0.0
    %1075 = vmatpush1.msra.mxu0 %v1010
    %1076 = vmatprep.subr.mxu0 0.0
    %1077 = vmatpush1.msra.mxu0 %v1011
    %1078 = vmatprep.subr.mxu0 0.0
    %1079 = vmatpush1.msra.mxu0 %v1012
    %1080 = vmatprep.subr.mxu0 0.0
    %1081 = vmatpush1.msra.mxu0 0.0
    %1082 = vmatprep.subr.mxu0 0.0
    %1083 = vmatpush1.msra.mxu0 0.0
    %1084 = vmatprep.subr.mxu0 0.0
    %1085 = vmatpush1.msra.mxu0 0.0
    %1086 = vmatprep.subr.mxu0 0.0
    %1087 = vmatpush1.msra.mxu0 0.0
    %1088 = vmatprep.subr.mxu0 0.0
    %1089 = vmatpush1.msra.mxu0 0.0
    %1090 = vmatprep.subr.mxu0 0.0
    %1091 = vmatpush1.msra.mxu0 0.0
    %1092 = vmatprep.subr.mxu0 0.0
    %1093 = vmatpush1.msra.mxu0 0.0
    %1094 = vmatprep.subr.mxu0 0.0
    %1095 = vmatpush1.msra.mxu0 0.0
    %1096 = vmatprep.subr.mxu0 0.0
    %1097 = vmatpush1.msra.mxu0 0.0
    %1098 = vmatprep.subr.mxu0 0.0
    %1099 = vmatpush1.msra.mxu0 0.0
    %1100 = vmatprep.subr.mxu0 0.0
    %1101 = vmatpush1.msra.mxu0 0.0
    %1102 = vmatprep.subr.mxu0 0.0
    %1103 = vmatpush1.msra.mxu0 0.0
    %1104 = vmatprep.subr.mxu0 0.0
    %1105 = vmatpush1.msra.mxu0 0.0
    %1106 = vmatprep.subr.mxu0 0.0
    %1107 = vmatpush1.msra.mxu0 0.0
    %1108 = vmatprep.subr.mxu0 0.0
    %1109 = vmatpush1.msra.mxu0 0.0
    %1110 = vmatprep.subr.mxu0 0.0
    %1111 = vmatpush1.msra.mxu0 0.0
    %1112 = vmatprep.subr.mxu0 0.0
    %1113 = vmatpush1.msra.mxu0 0.0
    %1114 = vmatprep.subr.mxu0 0.0
    %1115 = vmatpush1.msra.mxu0 0.0
    %1116 = vmatprep.subr.mxu0 0.0
    %1117 = vmatpush1.msra.mxu0 0.0
    %1118 = vmatprep.subr.mxu0 0.0
    %1119 = vmatpush1.msra.mxu0 0.0
    %1120 = vmatprep.subr.mxu0 0.0
    %1121 = vmatpush1.msra.mxu0 0.0
    %1122 = vmatprep.subr.mxu0 0.0
    %1123 = vmatpush1.msra.mxu0 0.0
    %1124 = vmatprep.subr.mxu0 0.0
    %1125 = vmatpush1.msra.mxu0 0.0
    %1126 = vmatprep.mubr.f32.mxu0 0.0
    %1127 = vmatmul.mubr.f32.gmra.mrb[0].mxu0 %v1015
    %v1128 = vpop.f32.mrb[0].mxu0
    %v1129 = vadd.f32 0.0, %v1128
    %v1130 = vpop.f32.mrb[0].mxu0
    %1131 = vmatprep.mubr.f32.mxu0 0.0
    %1132 = vmatmul.mubr.f32.gmra.mrb[0].mxu0 %v1018
    %v1133 = vpop.f32.mrb[0].mxu0
    %v1134 = vadd.f32 0.0, %v1133
    %v1135 = vpop.f32.mrb[0].mxu0
    %1136 = vmatprep.mubr.f32.mxu0 0.0
    %1137 = vmatmul.mubr.f32.gmra.mrb[0].mxu0 %v1021
    %v1138 = vpop.f32.mrb[0].mxu0
    %v1139 = vadd.f32 0.0, %v1138
    %v1140 = vpop.f32.mrb[0].mxu0
    %1141 = vmatprep.mubr.f32.mxu0 0.0
    %1142 = vmatmul.mubr.f32.gmra.mrb[0].mxu0 %v1024
    %v1143 = vpop.f32.mrb[0].mxu0
    %v1144 = vadd.f32 0.0, %v1143
    %v1145 = vpop.f32.mrb[0].mxu0
    %1146 = vmatprep.mubr.f32.mxu0 0.0
    %1147 = vmatmul.mubr.f32.gmra.mrb[0].mxu0 %v1027
    %v1148 = vpop.f32.mrb[0].mxu0
    %v1149 = vadd.f32 0.0, %v1148
    %v1150 = vpop.f32.mrb[0].mxu0
    %1151 = vmatprep.mubr.f32.mxu0 0.0
    %1152 = vmatmul.mubr.f32.gmra.mrb[0].mxu0 %v1030
    %v1153 = vpop.f32.mrb[0].mxu0
    %v1154 = vadd.f32 0.0, %v1153
    %v1155 = vpop.f32.mrb[0].mxu0
    %1156 = vmatprep.mubr.f32.mxu0 0.0
    %1157 = vmatmul.mubr.f32.gmra.mrb[0].mxu0 %v1033
    %v1158 = vpop.f32.mrb[0].mxu0
    %v1159 = vadd.f32 0.0, %v1158
    %v1160 = vpop.f32.mrb[0].mxu0
    %1161 = vmatprep.mubr.f32.mxu0 0.0
    %1162 = vmatmul.mubr.f32.gmra.mrb[0].mxu0 %v1036
    %v1163 = vpop.f32.mrb[0].mxu0
    %v1164 = vadd.f32 0.0, %v1163
    %v1165 = vpop.f32.mrb[0].mxu0
    %1166 = vmatprep.mubr.f32.mxu0 0.0
    %1167 = vmatmul.mubr.f32.gmra.mrb[0].mxu0 %v1039
    %v1168 = vpop.f32.mrb[0].mxu0
    %v1169 = vadd.f32 0.0, %v1168
    %v1170 = vpop.f32.mrb[0].mxu0
    %1171 = vmatprep.mubr.f32.mxu0 0.0
    %1172 = vmatmul.mubr.f32.gmra.mrb[0].mxu0 %v1042
    %v1173 = vpop.f32.mrb[0].mxu0
    %v1174 = vadd.f32 0.0, %v1173
    %v1175 = vpop.f32.mrb[0].mxu0
    %1176 = vmatprep.mubr.f32.mxu0 0.0
    %1177 = vmatmul.mubr.f32.gmra.mrb[0].mxu0 %v1045
    %v1178 = vpop.f32.mrb[0].mxu0
    %v1179 = vadd.f32 0.0, %v1178
    %v1180 = vpop.f32.mrb[0].mxu0
    %1181 = vmatprep.mubr.f32.mxu0 0.0
    %1182 = vmatmul.mubr.f32.gmra.mrb[0].mxu0 %v1048
    %v1183 = vpop.f32.mrb[0].mxu0
    %v1184 = vadd.f32 0.0, %v1183
    %v1185 = vpop.f32.mrb[0].mxu0
    %1186 = vmatprep.mubr.f32.mxu0 0.0
    %1187 = vmatmul.mubr.f32.gmra.mrb[0].mxu0 %v1051
    %v1188 = vpop.f32.mrb[0].mxu0
    %v1189 = vadd.f32 0.0, %v1188
    %v1190 = vpop.f32.mrb[0].mxu0
    %1191 = vmatprep.mubr.f32.mxu0 0.0
    %1192 = vmatmul.mubr.f32.gmra.mrb[0].mxu0 %v1054
    %v1193 = vpop.f32.mrb[0].mxu0
    %v1194 = vadd.f32 0.0, %v1193
    %v1195 = vpop.f32.mrb[0].mxu0
    %1196 = vmatprep.mubr.f32.mxu0 0.0
    %1197 = vmatmul.mubr.f32.gmra.mrb[0].mxu0 %v1057
    %v1198 = vpop.f32.mrb[0].mxu0
    %v1199 = vadd.f32 0.0, %v1198
    %v1200 = vpop.f32.mrb[0].mxu0
    %1201 = vmatprep.mubr.f32.mxu0 0.0
    %1202 = vmatmul.mubr.f32.gmra.mrb[0].mxu0 %v1060
    %v1203 = vpop.f32.mrb[0].mxu0
    %v1204 = vadd.f32 0.0, %v1203
    %v1205 = vpop.f32.mrb[0].mxu0
    %1206 = vdwg.mxu0
    %v1207 = vsel %vm870, %v1129, 0.0
    %v1208 = vsel %vm870, %v1134, 0.0
    %v1209 = vadd.f32 %v1207, %v1208
    %v1210 = vsel %vm870, %v1139, 0.0
    %v1211 = vadd.f32 %v1209, %v1210
    %v1212 = vsel %vm870, %v1144, 0.0
    %v1213 = vadd.f32 %v1211, %v1212
    %v1214 = vsel %vm870, %v1149, 0.0
    %v1215 = vadd.f32 %v1213, %v1214
    %v1216 = vsel %vm870, %v1154, 0.0
    %v1217 = vadd.f32 %v1215, %v1216
    %v1218 = vsel %vm870, %v1159, 0.0
    %v1219 = vadd.f32 %v1217, %v1218
    %v1220 = vsel %vm870, %v1164, 0.0
    %v1221 = vadd.f32 %v1219, %v1220
    %v1222 = vrot.slane %v1221, 4
    %v1223 = vadd.f32 %v1221, %v1222
    %v1224 = vrot.slane %v1223, 2
    %v1225 = vadd.f32 %v1223, %v1224
    %v1226 = vrot.slane %v1225, 1
    %v1227 = vadd.f32 %v1225, %v1226
    %v1228 = vsel %vm870, %v1169, 0.0
    %v1229 = vsel %vm870, %v1174, 0.0
    %v1230 = vadd.f32 %v1228, %v1229
    %v1231 = vsel %vm870, %v1179, 0.0
    %v1232 = vadd.f32 %v1230, %v1231
    %v1233 = vsel %vm870, %v1184, 0.0
    %v1234 = vadd.f32 %v1232, %v1233
    %v1235 = vsel %vm870, %v1189, 0.0
    %v1236 = vadd.f32 %v1234, %v1235
    %v1237 = vsel %vm870, %v1194, 0.0
    %v1238 = vadd.f32 %v1236, %v1237
    %v1239 = vsel %vm870, %v1199, 0.0
    %v1240 = vadd.f32 %v1238, %v1239
    %v1241 = vsel %vm870, %v1204, 0.0
    %v1242 = vadd.f32 %v1240, %v1241
    %v1243 = vrot.slane %v1242, 4
    %v1244 = vadd.f32 %v1242, %v1243
    %v1245 = vrot.slane %v1244, 2
    %v1246 = vadd.f32 %v1244, %v1245
    %v1247 = vrot.slane %v1246, 1
    %v1248 = vadd.f32 %v1246, %v1247
    %v1249 = vrcp.pop 64.0
    %v1250 = vmul.f32 %v1227, %v1249
    %v1251 = vmul.f32 %v1248, %v1249
    %v1252 = vsub.f32 %v1129, %v1250
    %v1253 = vsub.f32 %v1134, %v1250
    %v1254 = vsub.f32 %v1139, %v1250
    %v1255 = vsub.f32 %v1144, %v1250
    %v1256 = vsub.f32 %v1149, %v1250
    %v1257 = vsub.f32 %v1154, %v1250
    %v1258 = vsub.f32 %v1159, %v1250
    %v1259 = vsub.f32 %v1164, %v1250
    %v1260 = vsub.f32 %v1169, %v1251
    %v1261 = vsub.f32 %v1174, %v1251
    %v1262 = vsub.f32 %v1179, %v1251
    %v1263 = vsub.f32 %v1184, %v1251
    %v1264 = vsub.f32 %v1189, %v1251
    %v1265 = vsub.f32 %v1194, %v1251
    %v1266 = vsub.f32 %v1199, %v1251
    %v1267 = vsub.f32 %v1204, %v1251
    %v1268 = vmul.f32 %v1252, %v1252
    %v1269 = vmul.f32 %v1253, %v1253
    %v1270 = vmul.f32 %v1254, %v1254
    %v1271 = vmul.f32 %v1255, %v1255
    %v1272 = vmul.f32 %v1256, %v1256
    %v1273 = vmul.f32 %v1257, %v1257
    %v1274 = vmul.f32 %v1258, %v1258
    %v1275 = vmul.f32 %v1259, %v1259
    %v1276 = vmul.f32 %v1260, %v1260
    %v1277 = vmul.f32 %v1261, %v1261
    %v1278 = vmul.f32 %v1262, %v1262
    %v1279 = vmul.f32 %v1263, %v1263
    %v1280 = vmul.f32 %v1264, %v1264
    %v1281 = vmul.f32 %v1265, %v1265
    %v1282 = vmul.f32 %v1266, %v1266
    %v1283 = vmul.f32 %v1267, %v1267
    %v1284 = vsel %vm870, %v1268, 0.0
    %v1285 = vsel %vm870, %v1269, 0.0
    %v1286 = vadd.f32 %v1284, %v1285
    %v1287 = vsel %vm870, %v1270, 0.0
    %v1288 = vadd.f32 %v1286, %v1287
    %v1289 = vsel %vm870, %v1271, 0.0
    %v1290 = vadd.f32 %v1288, %v1289
    %v1291 = vsel %vm870, %v1272, 0.0
    %v1292 = vadd.f32 %v1290, %v1291
    %v1293 = vsel %vm870, %v1273, 0.0
    %v1294 = vadd.f32 %v1292, %v1293
    %v1295 = vsel %vm870, %v1274, 0.0
    %v1296 = vadd.f32 %v1294, %v1295
    %v1297 = vsel %vm870, %v1275, 0.0
    %v1298 = vadd.f32 %v1296, %v1297
    %v1299 = vrot.slane %v1298, 4
    %v1300 = vadd.f32 %v1298, %v1299
    %v1301 = vrot.slane %v1300, 2
    %v1302 = vadd.f32 %v1300, %v1301
    %v1303 = vrot.slane %v1302, 1
    %v1304 = vadd.f32 %v1302, %v1303
    %v1305 = vsel %vm870, %v1276, 0.0
    %v1306 = vsel %vm870, %v1277, 0.0
    %v1307 = vadd.f32 %v1305, %v1306
    %v1308 = vsel %vm870, %v1278, 0.0
    %v1309 = vadd.f32 %v1307, %v1308
    %v1310 = vsel %vm870, %v1279, 0.0
    %v1311 = vadd.f32 %v1309, %v1310
    %v1312 = vsel %vm870, %v1280, 0.0
    %v1313 = vadd.f32 %v1311, %v1312
    %v1314 = vsel %vm870, %v1281, 0.0
    %v1315 = vadd.f32 %v1313, %v1314
    %v1316 = vsel %vm870, %v1282, 0.0
    %v1317 = vadd.f32 %v1315, %v1316
    %v1318 = vsel %vm870, %v1283, 0.0
    %v1319 = vadd.f32 %v1317, %v1318
    %v1320 = vrot.slane %v1319, 4
    %v1321 = vadd.f32 %v1319, %v1320
    %v1322 = vrot.slane %v1321, 2
    %v1323 = vadd.f32 %v1321, %v1322
    %v1324 = vrot.slane %v1323, 1
    %v1325 = vadd.f32 %v1323, %v1324
    %v1326 = vmul.f32 %v1304, %v1249
    %v1327 = vmul.f32 %v1325, %v1249
    %v1328 = vadd.f32 %v1326, 1e-05
    %v1329 = vadd.f32 %v1327, 1e-05
    %v1330 = vrsqrt.pop %v1328
    %v1331 = vrsqrt.pop %v1329
    %v1332 = vmul.f32 %v1252, %v1330
    %v1333 = vmul.f32 %v1253, %v1330
    %v1334 = vmul.f32 %v1254, %v1330
    %v1335 = vmul.f32 %v1255, %v1330
    %v1336 = vmul.f32 %v1256, %v1330
    %v1337 = vmul.f32 %v1257, %v1330
    %v1338 = vmul.f32 %v1258, %v1330
    %v1339 = vmul.f32 %v1259, %v1330
    %v1340 = vmul.f32 %v1260, %v1331
    %v1341 = vmul.f32 %v1261, %v1331
    %v1342 = vmul.f32 %v1262, %v1331
    %v1343 = vmul.f32 %v1263, %v1331
    %v1344 = vmul.f32 %v1264, %v1331
    %v1345 = vmul.f32 %v1265, %v1331
    %v1346 = vmul.f32 %v1266, %v1331
    %v1347 = vmul.f32 %v1267, %v1331
    %v1364 = vrot.slane %v1332, 7
    %v1365 = vrot.slane %v1333, 7
    %v1366 = vrot.slane %v1334, 7
    %v1367 = vrot.slane %v1335, 7
    %v1368 = vrot.slane %v1336, 7
    %v1369 = vrot.slane %v1337, 7
    %v1370 = vrot.slane %v1338, 7
    %v1371 = vrot.slane %v1339, 7
    %v1372 = vrot.slane %v1340, 7
    %v1373 = vrot.slane %v1341, 7
    %v1374 = vrot.slane %v1342, 7
    %v1375 = vrot.slane %v1343, 7
    %v1376 = vrot.slane %v1344, 7
    %v1377 = vrot.slane %v1345, 7
    %v1378 = vrot.slane %v1346, 7
    %v1379 = vrot.slane %v1347, 7
    %v1396 = vsel %vm333, 0.0, %v1364
    %v1397 = vsel %vm333, 0.0, %v1365
    %v1398 = vsel %vm333, 0.0, %v1366
    %v1399 = vsel %vm333, 0.0, %v1367
    %v1400 = vsel %vm333, 0.0, %v1368
    %v1401 = vsel %vm333, 0.0, %v1369
    %v1402 = vsel %vm333, 0.0, %v1370
    %v1403 = vsel %vm333, 0.0, %v1371
    %v1404 = vsel %vm333, 0.0, %v1372
    %v1405 = vsel %vm333, 0.0, %v1373
    %v1406 = vsel %vm333, 0.0, %v1374
    %v1407 = vsel %vm333, 0.0, %v1375
    %v1408 = vsel %vm333, 0.0, %v1376
    %v1409 = vsel %vm333, 0.0, %v1377
    %v1410 = vsel %vm333, 0.0, %v1378
    %v1411 = vsel %vm333, 0.0, %v1379
    %v1412 = vsel %vm333, %v1364, 0.0
    %v1413 = vsel %vm333, %v1365, 0.0
    %v1414 = vsel %vm333, %v1366, 0.0
    %v1415 = vsel %vm333, %v1367, 0.0
    %v1416 = vsel %vm333, %v1368, 0.0
    %v1417 = vsel %vm333, %v1369, 0.0
    %v1418 = vsel %vm333, %v1370, 0.0
    %v1419 = vsel %vm333, %v1371, 0.0
    %v1420 = vsel %vm333, %v1372, 0.0
    %v1421 = vsel %vm333, %v1373, 0.0
    %v1422 = vsel %vm333, %v1374, 0.0
    %v1423 = vsel %vm333, %v1375, 0.0
    %v1424 = vsel %vm333, %v1376, 0.0
    %v1425 = vsel %vm333, %v1377, 0.0
    %v1426 = vsel %vm333, %v1378, 0.0
    %v1427 = vsel %vm333, %v1379, 0.0
    %v1456 = vrot.slane %v1396, 1
    %v1457 = vrot.slane %v1412, 1
    %v1458 = vsel %vm395, %v1456, %v1457
    %v1459 = vrot.slane %v1397, 1
    %v1460 = vrot.slane %v1413, 1
    %v1461 = vsel %vm395, %v1459, %v1460
    %v1462 = vrot.slane %v1398, 1
    %v1463 = vrot.slane %v1414, 1
    %v1464 = vsel %vm395, %v1462, %v1463
    %v1465 = vrot.slane %v1399, 1
    %v1466 = vrot.slane %v1415, 1
    %v1467 = vsel %vm395, %v1465, %v1466
    %v1468 = vrot.slane %v1400, 1
    %v1469 = vrot.slane %v1416, 1
    %v1470 = vsel %vm395, %v1468, %v1469
    %v1471 = vrot.slane %v1401, 1
    %v1472 = vrot.slane %v1417, 1
    %v1473 = vsel %vm395, %v1471, %v1472
    %v1474 = vrot.slane %v1402, 1
    %v1475 = vrot.slane %v1418, 1
    %v1476 = vsel %vm395, %v1474, %v1475
    %v1477 = vrot.slane %v1404, 1
    %v1478 = vrot.slane %v1420, 1
    %v1479 = vsel %vm395, %v1477, %v1478
    %v1480 = vrot.slane %v1405, 1
    %v1481 = vrot.slane %v1421, 1
    %v1482 = vsel %vm395, %v1480, %v1481
    %v1483 = vrot.slane %v1406, 1
    %v1484 = vrot.slane %v1422, 1
    %v1485 = vsel %vm395, %v1483, %v1484
    %v1486 = vrot.slane %v1407, 1
    %v1487 = vrot.slane %v1423, 1
    %v1488 = vsel %vm395, %v1486, %v1487
    %v1489 = vrot.slane %v1408, 1
    %v1490 = vrot.slane %v1424, 1
    %v1491 = vsel %vm395, %v1489, %v1490
    %v1492 = vrot.slane %v1409, 1
    %v1493 = vrot.slane %v1425, 1
    %v1494 = vsel %vm395, %v1492, %v1493
    %v1495 = vrot.slane %v1410, 1
    %v1496 = vrot.slane %v1426, 1
    %v1497 = vsel %vm395, %v1495, %v1496
    %1498 = vrot.lane.b32.xlu0 %v1458, 8
    %v1499 = vpop.permute.xlu0 %1498
    %1500 = vrot.lane.b32.xlu0 %v1461, 8
    %v1501 = vpop.permute.xlu0 %1500
    %1502 = vrot.lane.b32.xlu0 %v1464, 8
    %v1503 = vpop.permute.xlu0 %1502
    %1504 = vrot.lane.b32.xlu0 %v1467, 8
    %v1505 = vpop.permute.xlu0 %1504
    %1506 = vrot.lane.b32.xlu0 %v1470, 8
    %v1507 = vpop.permute.xlu0 %1506
    %1508 = vrot.lane.b32.xlu0 %v1473, 8
    %v1509 = vpop.permute.xlu0 %1508
    %1510 = vrot.lane.b32.xlu0 %v1476, 8
    %v1511 = vpop.permute.xlu0 %1510
    %1512 = vrot.lane.b32.xlu0 %v1479, 8
    %v1513 = vpop.permute.xlu0 %1512
    %1514 = vrot.lane.b32.xlu0 %v1482, 8
    %v1515 = vpop.permute.xlu0 %1514
    %1516 = vrot.lane.b32.xlu0 %v1485, 8
    %v1517 = vpop.permute.xlu0 %1516
    %1518 = vrot.lane.b32.xlu0 %v1488, 8
    %v1519 = vpop.permute.xlu0 %1518
    %1520 = vrot.lane.b32.xlu0 %v1491, 8
    %v1521 = vpop.permute.xlu0 %1520
    %1522 = vrot.lane.b32.xlu0 %v1494, 8
    %v1523 = vpop.permute.xlu0 %1522
    %1524 = vrot.lane.b32.xlu0 %v1497, 8
    %v1525 = vpop.permute.xlu0 %1524
    %v1540 = vrot.slane %v1396, 2
    %v1541 = vrot.slane %v1412, 2
    %v1542 = vsel %vm485, %v1540, %v1541
    %v1543 = vrot.slane %v1397, 2
    %v1544 = vrot.slane %v1413, 2
    %v1545 = vsel %vm485, %v1543, %v1544
    %v1546 = vrot.slane %v1398, 2
    %v1547 = vrot.slane %v1414, 2
    %v1548 = vsel %vm485, %v1546, %v1547
    %v1549 = vrot.slane %v1399, 2
    %v1550 = vrot.slane %v1415, 2
    %v1551 = vsel %vm485, %v1549, %v1550
    %v1552 = vrot.slane %v1400, 2
    %v1553 = vrot.slane %v1416, 2
    %v1554 = vsel %vm485, %v1552, %v1553
    %v1555 = vrot.slane %v1401, 2
    %v1556 = vrot.slane %v1417, 2
    %v1557 = vsel %vm485, %v1555, %v1556
    %v1558 = vrot.slane %v1402, 2
    %v1559 = vrot.slane %v1418, 2
    %v1560 = vsel %vm485, %v1558, %v1559
    %v1561 = vrot.slane %v1404, 2
    %v1562 = vrot.slane %v1420, 2
    %v1563 = vsel %vm485, %v1561, %v1562
    %v1564 = vrot.slane %v1405, 2
    %v1565 = vrot.slane %v1421, 2
    %v1566 = vsel %vm485, %v1564, %v1565
    %v1567 = vrot.slane %v1406, 2
    %v1568 = vrot.slane %v1422, 2
    %v1569 = vsel %vm485, %v1567, %v1568
    %v1570 = vrot.slane %v1407, 2
    %v1571 = vrot.slane %v1423, 2
    %v1572 = vsel %vm485, %v1570, %v1571
    %v1573 = vrot.slane %v1408, 2
    %v1574 = vrot.slane %v1424, 2
    %v1575 = vsel %vm485, %v1573, %v1574
    %v1576 = vrot.slane %v1409, 2
    %v1577 = vrot.slane %v1425, 2
    %v1578 = vsel %vm485, %v1576, %v1577
    %v1579 = vrot.slane %v1410, 2
    %v1580 = vrot.slane %v1426, 2
    %v1581 = vsel %vm485, %v1579, %v1580
    %1582 = vrot.lane.b32.xlu0 %v1542, 16
    %v1583 = vpop.permute.xlu0 %1582
    %1584 = vrot.lane.b32.xlu0 %v1545, 16
    %v1585 = vpop.permute.xlu0 %1584
    %1586 = vrot.lane.b32.xlu0 %v1548, 16
    %v1587 = vpop.permute.xlu0 %1586
    %1588 = vrot.lane.b32.xlu0 %v1551, 16
    %v1589 = vpop.permute.xlu0 %1588
    %1590 = vrot.lane.b32.xlu0 %v1554, 16
    %v1591 = vpop.permute.xlu0 %1590
    %1592 = vrot.lane.b32.xlu0 %v1557, 16
    %v1593 = vpop.permute.xlu0 %1592
    %1594 = vrot.lane.b32.xlu0 %v1560, 16
    %v1595 = vpop.permute.xlu0 %1594
    %1596 = vrot.lane.b32.xlu0 %v1563, 16
    %v1597 = vpop.permute.xlu0 %1596
    %1598 = vrot.lane.b32.xlu0 %v1566, 16
    %v1599 = vpop.permute.xlu0 %1598
    %1600 = vrot.lane.b32.xlu0 %v1569, 16
    %v1601 = vpop.permute.xlu0 %1600
    %1602 = vrot.lane.b32.xlu0 %v1572, 16
    %v1603 = vpop.permute.xlu0 %1602
    %1604 = vrot.lane.b32.xlu0 %v1575, 16
    %v1605 = vpop.permute.xlu0 %1604
    %1606 = vrot.lane.b32.xlu0 %v1578, 16
    %v1607 = vpop.permute.xlu0 %1606
    %1608 = vrot.lane.b32.xlu0 %v1581, 16
    %v1609 = vpop.permute.xlu0 %1608
    %1626 = vrot.lane.b32.xlu0 %v1396, 24
    %v1627 = vpop.permute.xlu0 %1626
    %1628 = vrot.lane.b32.xlu0 %v1397, 24
    %v1629 = vpop.permute.xlu0 %1628
    %1630 = vrot.lane.b32.xlu0 %v1398, 24
    %v1631 = vpop.permute.xlu0 %1630
    %1632 = vrot.lane.b32.xlu0 %v1399, 24
    %v1633 = vpop.permute.xlu0 %1632
    %1634 = vrot.lane.b32.xlu0 %v1400, 24
    %v1635 = vpop.permute.xlu0 %1634
    %1636 = vrot.lane.b32.xlu0 %v1401, 24
    %v1637 = vpop.permute.xlu0 %1636
    %1638 = vrot.lane.b32.xlu0 %v1402, 24
    %v1639 = vpop.permute.xlu0 %1638
    %1640 = vrot.lane.b32.xlu0 %v1403, 24
    %v1641 = vpop.permute.xlu0 %1640
    %1642 = vrot.lane.b32.xlu0 %v1404, 24
    %v1643 = vpop.permute.xlu0 %1642
    %1644 = vrot.lane.b32.xlu0 %v1405, 24
    %v1645 = vpop.permute.xlu0 %1644
    %1646 = vrot.lane.b32.xlu0 %v1406, 24
    %v1647 = vpop.permute.xlu0 %1646
    %1648 = vrot.lane.b32.xlu0 %v1407, 24
    %v1649 = vpop.permute.xlu0 %1648
    %1650 = vrot.lane.b32.xlu0 %v1408, 24
    %v1651 = vpop.permute.xlu0 %1650
    %1652 = vrot.lane.b32.xlu0 %v1409, 24
    %v1653 = vpop.permute.xlu0 %1652
    %1654 = vrot.lane.b32.xlu0 %v1410, 24
    %v1655 = vpop.permute.xlu0 %1654
    %1656 = vrot.lane.b32.xlu0 %v1411, 24
    %v1657 = vpop.permute.xlu0 %1656
    %v1676 = vrot.slane %v1403, 1
    %v1677 = vrot.slane %v1419, 1
    %v1678 = vsel %vm395, %v1676, %v1677
    %v1679 = vrot.slane %v1411, 1
    %v1680 = vrot.slane %v1427, 1
    %v1681 = vsel %vm395, %v1679, %v1680
    %1682 = vrot.lane.b32.xlu0 %v1458, 32
    %v1683 = vpop.permute.xlu0 %1682
    %1684 = vrot.lane.b32.xlu0 %v1461, 32
    %v1685 = vpop.permute.xlu0 %1684
    %1686 = vrot.lane.b32.xlu0 %v1464, 32
    %v1687 = vpop.permute.xlu0 %1686
    %1688 = vrot.lane.b32.xlu0 %v1467, 32
    %v1689 = vpop.permute.xlu0 %1688
    %1690 = vrot.lane.b32.xlu0 %v1470, 32
    %v1691 = vpop.permute.xlu0 %1690
    %1692 = vrot.lane.b32.xlu0 %v1473, 32
    %v1693 = vpop.permute.xlu0 %1692
    %1694 = vrot.lane.b32.xlu0 %v1476, 32
    %v1695 = vpop.permute.xlu0 %1694
    %1696 = vrot.lane.b32.xlu0 %v1678, 32
    %v1697 = vpop.permute.xlu0 %1696
    %1698 = vrot.lane.b32.xlu0 %v1479, 32
    %v1699 = vpop.permute.xlu0 %1698
    %1700 = vrot.lane.b32.xlu0 %v1482, 32
    %v1701 = vpop.permute.xlu0 %1700
    %1702 = vrot.lane.b32.xlu0 %v1485, 32
    %v1703 = vpop.permute.xlu0 %1702
    %1704 = vrot.lane.b32.xlu0 %v1488, 32
    %v1705 = vpop.permute.xlu0 %1704
    %1706 = vrot.lane.b32.xlu0 %v1491, 32
    %v1707 = vpop.permute.xlu0 %1706
    %1708 = vrot.lane.b32.xlu0 %v1494, 32
    %v1709 = vpop.permute.xlu0 %1708
    %1710 = vrot.lane.b32.xlu0 %v1497, 32
    %v1711 = vpop.permute.xlu0 %1710
    %1712 = vrot.lane.b32.xlu0 %v1681, 32
    %v1713 = vpop.permute.xlu0 %1712
    %v1730 = vrot.slane %v1403, 2
    %v1731 = vrot.slane %v1419, 2
    %v1732 = vsel %vm485, %v1730, %v1731
    %v1733 = vrot.slane %v1411, 2
    %v1734 = vrot.slane %v1427, 2
    %v1735 = vsel %vm485, %v1733, %v1734
    %1736 = vrot.lane.b32.xlu0 %v1542, 40
    %v1737 = vpop.permute.xlu0 %1736
    %1738 = vrot.lane.b32.xlu0 %v1545, 40
    %v1739 = vpop.permute.xlu0 %1738
    %1740 = vrot.lane.b32.xlu0 %v1548, 40
    %v1741 = vpop.permute.xlu0 %1740
    %1742 = vrot.lane.b32.xlu0 %v1551, 40
    %v1743 = vpop.permute.xlu0 %1742
    %1744 = vrot.lane.b32.xlu0 %v1554, 40
    %v1745 = vpop.permute.xlu0 %1744
    %1746 = vrot.lane.b32.xlu0 %v1557, 40
    %v1747 = vpop.permute.xlu0 %1746
    %1748 = vrot.lane.b32.xlu0 %v1560, 40
    %v1749 = vpop.permute.xlu0 %1748
    %1750 = vrot.lane.b32.xlu0 %v1732, 40
    %v1751 = vpop.permute.xlu0 %1750
    %1752 = vrot.lane.b32.xlu0 %v1563, 40
    %v1753 = vpop.permute.xlu0 %1752
    %1754 = vrot.lane.b32.xlu0 %v1566, 40
    %v1755 = vpop.permute.xlu0 %1754
    %1756 = vrot.lane.b32.xlu0 %v1569, 40
    %v1757 = vpop.permute.xlu0 %1756
    %1758 = vrot.lane.b32.xlu0 %v1572, 40
    %v1759 = vpop.permute.xlu0 %1758
    %1760 = vrot.lane.b32.xlu0 %v1575, 40
    %v1761 = vpop.permute.xlu0 %1760
    %1762 = vrot.lane.b32.xlu0 %v1578, 40
    %v1763 = vpop.permute.xlu0 %1762
    %1764 = vrot.lane.b32.xlu0 %v1581, 40
    %v1765 = vpop.permute.xlu0 %1764
    %1766 = vrot.lane.b32.xlu0 %v1735, 40
    %v1767 = vpop.permute.xlu0 %1766
    %1784 = vrot.lane.b32.xlu0 %v1397, 48
    %v1785 = vpop.permute.xlu0 %1784
    %1786 = vrot.lane.b32.xlu0 %v1398, 48
    %v1787 = vpop.permute.xlu0 %1786
    %1788 = vrot.lane.b32.xlu0 %v1399, 48
    %v1789 = vpop.permute.xlu0 %1788
    %1790 = vrot.lane.b32.xlu0 %v1400, 48
    %v1791 = vpop.permute.xlu0 %1790
    %1792 = vrot.lane.b32.xlu0 %v1401, 48
    %v1793 = vpop.permute.xlu0 %1792
    %1794 = vrot.lane.b32.xlu0 %v1402, 48
    %v1795 = vpop.permute.xlu0 %1794
    %1796 = vrot.lane.b32.xlu0 %v1403, 48
    %v1797 = vpop.permute.xlu0 %1796
    %1798 = vrot.lane.b32.xlu0 %v1405, 48
    %v1799 = vpop.permute.xlu0 %1798
    %1800 = vrot.lane.b32.xlu0 %v1406, 48
    %v1801 = vpop.permute.xlu0 %1800
    %1802 = vrot.lane.b32.xlu0 %v1407, 48
    %v1803 = vpop.permute.xlu0 %1802
    %1804 = vrot.lane.b32.xlu0 %v1408, 48
    %v1805 = vpop.permute.xlu0 %1804
    %1806 = vrot.lane.b32.xlu0 %v1409, 48
    %v1807 = vpop.permute.xlu0 %1806
    %1808 = vrot.lane.b32.xlu0 %v1410, 48
    %v1809 = vpop.permute.xlu0 %1808
    %1810 = vrot.lane.b32.xlu0 %v1411, 48
    %v1811 = vpop.permute.xlu0 %1810
    %1826 = vrot.lane.b32.xlu0 %v1461, 56
    %v1827 = vpop.permute.xlu0 %1826
    %1828 = vrot.lane.b32.xlu0 %v1464, 56
    %v1829 = vpop.permute.xlu0 %1828
    %1830 = vrot.lane.b32.xlu0 %v1467, 56
    %v1831 = vpop.permute.xlu0 %1830
    %1832 = vrot.lane.b32.xlu0 %v1470, 56
    %v1833 = vpop.permute.xlu0 %1832
    %1834 = vrot.lane.b32.xlu0 %v1473, 56
    %v1835 = vpop.permute.xlu0 %1834
    %1836 = vrot.lane.b32.xlu0 %v1476, 56
    %v1837 = vpop.permute.xlu0 %1836
    %1838 = vrot.lane.b32.xlu0 %v1678, 56
    %v1839 = vpop.permute.xlu0 %1838
    %1840 = vrot.lane.b32.xlu0 %v1482, 56
    %v1841 = vpop.permute.xlu0 %1840
    %1842 = vrot.lane.b32.xlu0 %v1485, 56
    %v1843 = vpop.permute.xlu0 %1842
    %1844 = vrot.lane.b32.xlu0 %v1488, 56
    %v1845 = vpop.permute.xlu0 %1844
    %1846 = vrot.lane.b32.xlu0 %v1491, 56
    %v1847 = vpop.permute.xlu0 %1846
    %1848 = vrot.lane.b32.xlu0 %v1494, 56
    %v1849 = vpop.permute.xlu0 %1848
    %1850 = vrot.lane.b32.xlu0 %v1497, 56
    %v1851 = vpop.permute.xlu0 %1850
    %1852 = vrot.lane.b32.xlu0 %v1681, 56
    %v1853 = vpop.permute.xlu0 %1852
    %1868 = vrot.lane.b32.xlu0 %v1545, 64
    %v1869 = vpop.permute.xlu0 %1868
    %1870 = vrot.lane.b32.xlu0 %v1548, 64
    %v1871 = vpop.permute.xlu0 %1870
    %1872 = vrot.lane.b32.xlu0 %v1551, 64
    %v1873 = vpop.permute.xlu0 %1872
    %1874 = vrot.lane.b32.xlu0 %v1554, 64
    %v1875 = vpop.permute.xlu0 %1874
    %1876 = vrot.lane.b32.xlu0 %v1557, 64
    %v1877 = vpop.permute.xlu0 %1876
    %1878 = vrot.lane.b32.xlu0 %v1560, 64
    %v1879 = vpop.permute.xlu0 %1878
    %1880 = vrot.lane.b32.xlu0 %v1732, 64
    %v1881 = vpop.permute.xlu0 %1880
    %1882 = vrot.lane.b32.xlu0 %v1566, 64
    %v1883 = vpop.permute.xlu0 %1882
    %1884 = vrot.lane.b32.xlu0 %v1569, 64
    %v1885 = vpop.permute.xlu0 %1884
    %1886 = vrot.lane.b32.xlu0 %v1572, 64
    %v1887 = vpop.permute.xlu0 %1886
    %1888 = vrot.lane.b32.xlu0 %v1575, 64
    %v1889 = vpop.permute.xlu0 %1888
    %1890 = vrot.lane.b32.xlu0 %v1578, 64
    %v1891 = vpop.permute.xlu0 %1890
    %1892 = vrot.lane.b32.xlu0 %v1581, 64
    %v1893 = vpop.permute.xlu0 %1892
    %1894 = vrot.lane.b32.xlu0 %v1735, 64
    %v1895 = vpop.permute.xlu0 %1894
    %v1910 = vsel %vm870, %v1396, %v1499
    %v1911 = vsel %vm870, %v1397, %v1501
    %v1912 = vsel %vm870, %v1398, %v1503
    %v1913 = vsel %vm870, %v1399, %v1505
    %v1914 = vsel %vm870, %v1400, %v1507
    %v1915 = vsel %vm870, %v1401, %v1509
    %v1916 = vsel %vm870, %v1402, %v1511
    %v1917 = vsel %vm870, %v1404, %v1513
    %v1918 = vsel %vm870, %v1405, %v1515
    %v1919 = vsel %vm870, %v1406, %v1517
    %v1920 = vsel %vm870, %v1407, %v1519
    %v1921 = vsel %vm870, %v1408, %v1521
    %v1922 = vsel %vm870, %v1409, %v1523
    %v1923 = vsel %vm870, %v1410, %v1525
    %v1924 = vsel %vm886, %v1910, %v1583
    %v1925 = vsel %vm886, %v1911, %v1585
    %v1926 = vsel %vm886, %v1912, %v1587
    %v1927 = vsel %vm886, %v1913, %v1589
    %v1928 = vsel %vm886, %v1914, %v1591
    %v1929 = vsel %vm886, %v1915, %v1593
    %v1930 = vsel %vm886, %v1916, %v1595
    %v1931 = vsel %vm886, %v1917, %v1597
    %v1932 = vsel %vm886, %v1918, %v1599
    %v1933 = vsel %vm886, %v1919, %v1601
    %v1934 = vsel %vm886, %v1920, %v1603
    %v1935 = vsel %vm886, %v1921, %v1605
    %v1936 = vsel %vm886, %v1922, %v1607
    %v1937 = vsel %vm886, %v1923, %v1609
    %v1938 = vsel %vm902, %v887, %v1627
    %v1939 = vsel %vm902, %v1924, %v1629
    %v1940 = vsel %vm902, %v1925, %v1631
    %v1941 = vsel %vm902, %v1926, %v1633
    %v1942 = vsel %vm902, %v1927, %v1635
    %v1943 = vsel %vm902, %v1928, %v1637
    %v1944 = vsel %vm902, %v1929, %v1639
    %v1945 = vsel %vm902, %v1930, %v1641
    %v1946 = vsel %vm902, %v887, %v1643
    %v1947 = vsel %vm902, %v1931, %v1645
    %v1948 = vsel %vm902, %v1932, %v1647
    %v1949 = vsel %vm902, %v1933, %v1649
    %v1950 = vsel %vm902, %v1934, %v1651
    %v1951 = vsel %vm902, %v1935, %v1653
    %v1952 = vsel %vm902, %v1936, %v1655
    %v1953 = vsel %vm902, %v1937, %v1657
    %v1954 = vsel %vm919, %v1938, %v1683
    %v1955 = vsel %vm919, %v1939, %v1685
    %v1956 = vsel %vm919, %v1940, %v1687
    %v1957 = vsel %vm919, %v1941, %v1689
    %v1958 = vsel %vm919, %v1942, %v1691
    %v1959 = vsel %vm919, %v1943, %v1693
    %v1960 = vsel %vm919, %v1944, %v1695
    %v1961 = vsel %vm919, %v1945, %v1697
    %v1962 = vsel %vm919, %v1946, %v1699
    %v1963 = vsel %vm919, %v1947, %v1701
    %v1964 = vsel %vm919, %v1948, %v1703
    %v1965 = vsel %vm919, %v1949, %v1705
    %v1966 = vsel %vm919, %v1950, %v1707
    %v1967 = vsel %vm919, %v1951, %v1709
    %v1968 = vsel %vm919, %v1952, %v1711
    %v1969 = vsel %vm919, %v1953, %v1713
    %v1970 = vsel %vm936, %v1954, %v1737
    %v1971 = vsel %vm936, %v1955, %v1739
    %v1972 = vsel %vm936, %v1956, %v1741
    %v1973 = vsel %vm936, %v1957, %v1743
    %v1974 = vsel %vm936, %v1958, %v1745
    %v1975 = vsel %vm936, %v1959, %v1747
    %v1976 = vsel %vm936, %v1960, %v1749
    %v1977 = vsel %vm936, %v1961, %v1751
    %v1978 = vsel %vm936, %v1962, %v1753
    %v1979 = vsel %vm936, %v1963, %v1755
    %v1980 = vsel %vm936, %v1964, %v1757
    %v1981 = vsel %vm936, %v1965, %v1759
    %v1982 = vsel %vm936, %v1966, %v1761
    %v1983 = vsel %vm936, %v1967, %v1763
    %v1984 = vsel %vm936, %v1968, %v1765
    %v1985 = vsel %vm936, %v1969, %v1767
    %v1986 = vsel %vm953, %v1970, %v1785
    %v1987 = vsel %vm953, %v1971, %v1787
    %v1988 = vsel %vm953, %v1972, %v1789
    %v1989 = vsel %vm953, %v1973, %v1791
    %v1990 = vsel %vm953, %v1974, %v1793
    %v1991 = vsel %vm953, %v1975, %v1795
    %v1992 = vsel %vm953, %v1976, %v1797
    %v1993 = vsel %vm953, %v1977, %v750
    %v1994 = vsel %vm953, %v1978, %v1799
    %v1995 = vsel %vm953, %v1979, %v1801
    %v1996 = vsel %vm953, %v1980, %v1803
    %v1997 = vsel %vm953, %v1981, %v1805
    %v1998 = vsel %vm953, %v1982, %v1807
    %v1999 = vsel %vm953, %v1983, %v1809
    %v2000 = vsel %vm953, %v1984, %v1811
    %v2001 = vsel %vm953, %v1985, %v750
    %v2002 = vsel %vm970, %v1986, %v1827
    %v2003 = vsel %vm970, %v1987, %v1829
    %v2004 = vsel %vm970, %v1988, %v1831
    %v2005 = vsel %vm970, %v1989, %v1833
    %v2006 = vsel %vm970, %v1990, %v1835
    %v2007 = vsel %vm970, %v1991, %v1837
    %v2008 = vsel %vm970, %v1992, %v1839
    %v2009 = vsel %vm970, %v1993, %v795
    %v2010 = vsel %vm970, %v1994, %v1841
    %v2011 = vsel %vm970, %v1995, %v1843
    %v2012 = vsel %vm970, %v1996, %v1845
    %v2013 = vsel %vm970, %v1997, %v1847
    %v2014 = vsel %vm970, %v1998, %v1849
    %v2015 = vsel %vm970, %v1999, %v1851
    %v2016 = vsel %vm970, %v2000, %v1853
    %v2017 = vsel %vm970, %v2001, %v795
    %v2018 = vsel %vm987, %v2002, %v1869
    %v2019 = vsel %vm987, %v2003, %v1871
    %v2020 = vsel %vm987, %v2004, %v1873
    %v2021 = vsel %vm987, %v2005, %v1875
    %v2022 = vsel %vm987, %v2006, %v1877
    %v2023 = vsel %vm987, %v2007, %v1879
    %v2024 = vsel %vm987, %v2008, %v1881
    %v2025 = vsel %vm987, %v2009, %v840
    %v2026 = vsel %vm987, %v2010, %v1883
    %v2027 = vsel %vm987, %v2011, %v1885
    %v2028 = vsel %vm987, %v2012, %v1887
    %v2029 = vsel %vm987, %v2013, %v1889
    %v2030 = vsel %vm987, %v2014, %v1891
    %v2031 = vsel %vm987, %v2015, %v1893
    %v2032 = vsel %vm987, %v2016, %v1895
    %v2033 = vsel %vm987, %v2017, %v840
    %v2034 = vld [vmem:[%s2] sm:$0xff]
    %v2035 = vld [vmem:[%s2 + $0x8] sm:$0xff]
    %v2036 = vld [vmem:[%s2 + $0x10] sm:$0xff]
    %v2037 = vld [vmem:[%s2 + $0x18] sm:$0xff]
    %v2038 = vld [vmem:[%s2 + $0x20] sm:$0xff]
    %v2039 = vld [vmem:[%s2 + $0x28] sm:$0xff]
    %v2040 = vld [vmem:[%s2 + $0x30] sm:$0xff]
    %v2041 = vld [vmem:[%s2 + $0x38] sm:$0xff]
    %v2042 = vld [vmem:[%s2 + $0x40] sm:$0xff]
    %v2044 = vsel %vm1013, %v2018, 0
    %v2047 = vsel %vm1013, %v2019, 0
    %v2050 = vsel %vm1013, %v2020, 0
    %v2053 = vsel %vm1013, %v2021, 0
    %v2056 = vsel %vm1013, %v2022, 0
    %v2059 = vsel %vm1013, %v2023, 0
    %v2062 = vsel %vm1013, %v2024, 0
    %v2065 = vsel %vm1013, %v2025, 0
    %v2068 = vsel %vm1013, %v2026, 0
    %v2071 = vsel %vm1013, %v2027, 0
    %v2074 = vsel %vm1013, %v2028, 0
    %v2077 = vsel %vm1013, %v2029, 0
    %v2080 = vsel %vm1013, %v2030, 0
    %v2083 = vsel %vm1013, %v2031, 0
    %v2086 = vsel %vm1013, %v2032, 0
    %v2089 = vsel %vm1013, %v2033, 0
    %2091 = vmatprep.subr.mxu0 0.0
    %2092 = vmatpush1.msra.mxu0 %v2034
    %2093 = vmatprep.subr.mxu0 0.0
    %2094 = vmatpush1.msra.mxu0 %v2035
    %2095 = vmatprep.subr.mxu0 0.0
    %2096 = vmatpush1.msra.mxu0 %v2036
    %2097 = vmatprep.subr.mxu0 0.0
    %2098 = vmatpush1.msra.mxu0 %v2037
    %2099 = vmatprep.subr.mxu0 0.0
    %2100 = vmatpush1.msra.mxu0 %v2038
    %2101 = vmatprep.subr.mxu0 0.0
    %2102 = vmatpush1.msra.mxu0 %v2039
    %2103 = vmatprep.subr.mxu0 0.0
    %2104 = vmatpush1.msra.mxu0 %v2040
    %2105 = vmatprep.subr.mxu0 0.0
    %2106 = vmatpush1.msra.mxu0 %v2041
    %2107 = vmatprep.subr.mxu0 0.0
    %2108 = vmatpush1.msra.mxu0 %v2042
    %2109 = vmatprep.subr.mxu0 0.0
    %2110 = vmatpush1.msra.mxu0 0.0
    %2111 = vmatprep.subr.mxu0 0.0
    %2112 = vmatpush1.msra.mxu0 0.0
    %2113 = vmatprep.subr.mxu0 0.0
    %2114 = vmatpush1.msra.mxu0 0.0
    %2115 = vmatprep.subr.mxu0 0.0
    %2116 = vmatpush1.msra.mxu0 0.0
    %2117 = vmatprep.subr.mxu0 0.0
    %2118 = vmatpush1.msra.mxu0 0.0
    %2119 = vmatprep.subr.mxu0 0.0
    %2120 = vmatpush1.msra.mxu0 0.0
    %2121 = vmatprep.subr.mxu0 0.0
    %2122 = vmatpush1.msra.mxu0 0.0
    %2123 = vmatprep.subr.mxu0 0.0
    %2124 = vmatpush1.msra.mxu0 0.0
    %2125 = vmatprep.subr.mxu0 0.0
    %2126 = vmatpush1.msra.mxu0 0.0
    %2127 = vmatprep.subr.mxu0 0.0
    %2128 = vmatpush1.msra.mxu0 0.0
    %2129 = vmatprep.subr.mxu0 0.0
    %2130 = vmatpush1.msra.mxu0 0.0
    %2131 = vmatprep.subr.mxu0 0.0
    %2132 = vmatpush1.msra.mxu0 0.0
    %2133 = vmatprep.subr.mxu0 0.0
    %2134 = vmatpush1.msra.mxu0 0.0
    %2135 = vmatprep.subr.mxu0 0.0
    %2136 = vmatpush1.msra.mxu0 0.0
    %2137 = vmatprep.subr.mxu0 0.0
    %2138 = vmatpush1.msra.mxu0 0.0
    %2139 = vmatprep.subr.mxu0 0.0
    %2140 = vmatpush1.msra.mxu0 0.0
    %2141 = vmatprep.subr.mxu0 0.0
    %2142 = vmatpush1.msra.mxu0 0.0
    %2143 = vmatprep.subr.mxu0 0.0
    %2144 = vmatpush1.msra.mxu0 0.0
    %2145 = vmatprep.subr.mxu0 0.0
    %2146 = vmatpush1.msra.mxu0 0.0
    %2147 = vmatprep.subr.mxu0 0.0
    %2148 = vmatpush1.msra.mxu0 0.0
    %2149 = vmatprep.subr.mxu0 0.0
    %2150 = vmatpush1.msra.mxu0 0.0
    %2151 = vmatprep.subr.mxu0 0.0
    %2152 = vmatpush1.msra.mxu0 0.0
    %2153 = vmatprep.subr.mxu0 0.0
    %2154 = vmatpush1.msra.mxu0 0.0
    %2155 = vmatprep.mubr.f32.mxu0 0.0
    %2156 = vmatmul.mubr.f32.gmra.mrb[0].mxu0 %v2044
    %v2157 = vpop.f32.mrb[0].mxu0
    %v2158 = vadd.f32 0.0, %v2157
    %v2159 = vpop.f32.mrb[0].mxu0
    %2160 = vmatprep.mubr.f32.mxu0 0.0
    %2161 = vmatmul.mubr.f32.gmra.mrb[0].mxu0 %v2047
    %v2162 = vpop.f32.mrb[0].mxu0
    %v2163 = vadd.f32 0.0, %v2162
    %v2164 = vpop.f32.mrb[0].mxu0
    %2165 = vmatprep.mubr.f32.mxu0 0.0
    %2166 = vmatmul.mubr.f32.gmra.mrb[0].mxu0 %v2050
    %v2167 = vpop.f32.mrb[0].mxu0
    %v2168 = vadd.f32 0.0, %v2167
    %v2169 = vpop.f32.mrb[0].mxu0
    %2170 = vmatprep.mubr.f32.mxu0 0.0
    %2171 = vmatmul.mubr.f32.gmra.mrb[0].mxu0 %v2053
    %v2172 = vpop.f32.mrb[0].mxu0
    %v2173 = vadd.f32 0.0, %v2172
    %v2174 = vpop.f32.mrb[0].mxu0
    %2175 = vmatprep.mubr.f32.mxu0 0.0
    %2176 = vmatmul.mubr.f32.gmra.mrb[0].mxu0 %v2056
    %v2177 = vpop.f32.mrb[0].mxu0
    %v2178 = vadd.f32 0.0, %v2177
    %v2179 = vpop.f32.mrb[0].mxu0
    %2180 = vmatprep.mubr.f32.mxu0 0.0
    %2181 = vmatmul.mubr.f32.gmra.mrb[0].mxu0 %v2059
    %v2182 = vpop.f32.mrb[0].mxu0
    %v2183 = vadd.f32 0.0, %v2182
    %v2184 = vpop.f32.mrb[0].mxu0
    %2185 = vmatprep.mubr.f32.mxu0 0.0
    %2186 = vmatmul.mubr.f32.gmra.mrb[0].mxu0 %v2062
    %v2187 = vpop.f32.mrb[0].mxu0
    %v2188 = vadd.f32 0.0, %v2187
    %v2189 = vpop.f32.mrb[0].mxu0
    %2190 = vmatprep.mubr.f32.mxu0 0.0
    %2191 = vmatmul.mubr.f32.gmra.mrb[0].mxu0 %v2065
    %v2192 = vpop.f32.mrb[0].mxu0
    %v2193 = vadd.f32 0.0, %v2192
    %v2194 = vpop.f32.mrb[0].mxu0
    %2195 = vmatprep.mubr.f32.mxu0 0.0
    %2196 = vmatmul.mubr.f32.gmra.mrb[0].mxu0 %v2068
    %v2197 = vpop.f32.mrb[0].mxu0
    %v2198 = vadd.f32 0.0, %v2197
    %v2199 = vpop.f32.mrb[0].mxu0
    %2200 = vmatprep.mubr.f32.mxu0 0.0
    %2201 = vmatmul.mubr.f32.gmra.mrb[0].mxu0 %v2071
    %v2202 = vpop.f32.mrb[0].mxu0
    %v2203 = vadd.f32 0.0, %v2202
    %v2204 = vpop.f32.mrb[0].mxu0
    %2205 = vmatprep.mubr.f32.mxu0 0.0
    %2206 = vmatmul.mubr.f32.gmra.mrb[0].mxu0 %v2074
    %v2207 = vpop.f32.mrb[0].mxu0
    %v2208 = vadd.f32 0.0, %v2207
    %v2209 = vpop.f32.mrb[0].mxu0
    %2210 = vmatprep.mubr.f32.mxu0 0.0
    %2211 = vmatmul.mubr.f32.gmra.mrb[0].mxu0 %v2077
    %v2212 = vpop.f32.mrb[0].mxu0
    %v2213 = vadd.f32 0.0, %v2212
    %v2214 = vpop.f32.mrb[0].mxu0
    %2215 = vmatprep.mubr.f32.mxu0 0.0
    %2216 = vmatmul.mubr.f32.gmra.mrb[0].mxu0 %v2080
    %v2217 = vpop.f32.mrb[0].mxu0
    %v2218 = vadd.f32 0.0, %v2217
    %v2219 = vpop.f32.mrb[0].mxu0
    %2220 = vmatprep.mubr.f32.mxu0 0.0
    %2221 = vmatmul.mubr.f32.gmra.mrb[0].mxu0 %v2083
    %v2222 = vpop.f32.mrb[0].mxu0
    %v2223 = vadd.f32 0.0, %v2222
    %v2224 = vpop.f32.mrb[0].mxu0
    %2225 = vmatprep.mubr.f32.mxu0 0.0
    %2226 = vmatmul.mubr.f32.gmra.mrb[0].mxu0 %v2086
    %v2227 = vpop.f32.mrb[0].mxu0
    %v2228 = vadd.f32 0.0, %v2227
    %v2229 = vpop.f32.mrb[0].mxu0
    %2230 = vmatprep.mubr.f32.mxu0 0.0
    %2231 = vmatmul.mubr.f32.gmra.mrb[0].mxu0 %v2089
    %v2232 = vpop.f32.mrb[0].mxu0
    %v2233 = vadd.f32 0.0, %v2232
    %v2234 = vpop.f32.mrb[0].mxu0
    %2235 = vdwg.mxu0
    %v2236 = vsel %vm870, %v2158, 0.0
    %v2237 = vsel %vm870, %v2163, 0.0
    %v2238 = vadd.f32 %v2236, %v2237
    %v2239 = vsel %vm870, %v2168, 0.0
    %v2240 = vadd.f32 %v2238, %v2239
    %v2241 = vsel %vm870, %v2173, 0.0
    %v2242 = vadd.f32 %v2240, %v2241
    %v2243 = vsel %vm870, %v2178, 0.0
    %v2244 = vadd.f32 %v2242, %v2243
    %v2245 = vsel %vm870, %v2183, 0.0
    %v2246 = vadd.f32 %v2244, %v2245
    %v2247 = vsel %vm870, %v2188, 0.0
    %v2248 = vadd.f32 %v2246, %v2247
    %v2249 = vsel %vm870, %v2193, 0.0
    %v2250 = vadd.f32 %v2248, %v2249
    %v2251 = vrot.slane %v2250, 4
    %v2252 = vadd.f32 %v2250, %v2251
    %v2253 = vrot.slane %v2252, 2
    %v2254 = vadd.f32 %v2252, %v2253
    %v2255 = vrot.slane %v2254, 1
    %v2256 = vadd.f32 %v2254, %v2255
    %v2257 = vsel %vm870, %v2198, 0.0
    %v2258 = vsel %vm870, %v2203, 0.0
    %v2259 = vadd.f32 %v2257, %v2258
    %v2260 = vsel %vm870, %v2208, 0.0
    %v2261 = vadd.f32 %v2259, %v2260
    %v2262 = vsel %vm870, %v2213, 0.0
    %v2263 = vadd.f32 %v2261, %v2262
    %v2264 = vsel %vm870, %v2218, 0.0
    %v2265 = vadd.f32 %v2263, %v2264
    %v2266 = vsel %vm870, %v2223, 0.0
    %v2267 = vadd.f32 %v2265, %v2266
    %v2268 = vsel %vm870, %v2228, 0.0
    %v2269 = vadd.f32 %v2267, %v2268
    %v2270 = vsel %vm870, %v2233, 0.0
    %v2271 = vadd.f32 %v2269, %v2270
    %v2272 = vrot.slane %v2271, 4
    %v2273 = vadd.f32 %v2271, %v2272
    %v2274 = vrot.slane %v2273, 2
    %v2275 = vadd.f32 %v2273, %v2274
    %v2276 = vrot.slane %v2275, 1
    %v2277 = vadd.f32 %v2275, %v2276
    %v2278 = vmul.f32 %v2256, %v1249
    %v2279 = vmul.f32 %v2277, %v1249
    %v2280 = vsub.f32 %v2158, %v2278
    %v2281 = vsub.f32 %v2163, %v2278
    %v2282 = vsub.f32 %v2168, %v2278
    %v2283 = vsub.f32 %v2173, %v2278
    %v2284 = vsub.f32 %v2178, %v2278
    %v2285 = vsub.f32 %v2183, %v2278
    %v2286 = vsub.f32 %v2188, %v2278
    %v2287 = vsub.f32 %v2193, %v2278
    %v2288 = vsub.f32 %v2198, %v2279
    %v2289 = vsub.f32 %v2203, %v2279
    %v2290 = vsub.f32 %v2208, %v2279
    %v2291 = vsub.f32 %v2213, %v2279
    %v2292 = vsub.f32 %v2218, %v2279
    %v2293 = vsub.f32 %v2223, %v2279
    %v2294 = vsub.f32 %v2228, %v2279
    %v2295 = vsub.f32 %v2233, %v2279
    %v2296 = vmul.f32 %v2280, %v2280
    %v2297 = vmul.f32 %v2281, %v2281
    %v2298 = vmul.f32 %v2282, %v2282
    %v2299 = vmul.f32 %v2283, %v2283
    %v2300 = vmul.f32 %v2284, %v2284
    %v2301 = vmul.f32 %v2285, %v2285
    %v2302 = vmul.f32 %v2286, %v2286
    %v2303 = vmul.f32 %v2287, %v2287
    %v2304 = vmul.f32 %v2288, %v2288
    %v2305 = vmul.f32 %v2289, %v2289
    %v2306 = vmul.f32 %v2290, %v2290
    %v2307 = vmul.f32 %v2291, %v2291
    %v2308 = vmul.f32 %v2292, %v2292
    %v2309 = vmul.f32 %v2293, %v2293
    %v2310 = vmul.f32 %v2294, %v2294
    %v2311 = vmul.f32 %v2295, %v2295
    %v2312 = vsel %vm870, %v2296, 0.0
    %v2313 = vsel %vm870, %v2297, 0.0
    %v2314 = vadd.f32 %v2312, %v2313
    %v2315 = vsel %vm870, %v2298, 0.0
    %v2316 = vadd.f32 %v2314, %v2315
    %v2317 = vsel %vm870, %v2299, 0.0
    %v2318 = vadd.f32 %v2316, %v2317
    %v2319 = vsel %vm870, %v2300, 0.0
    %v2320 = vadd.f32 %v2318, %v2319
    %v2321 = vsel %vm870, %v2301, 0.0
    %v2322 = vadd.f32 %v2320, %v2321
    %v2323 = vsel %vm870, %v2302, 0.0
    %v2324 = vadd.f32 %v2322, %v2323
    %v2325 = vsel %vm870, %v2303, 0.0
    %v2326 = vadd.f32 %v2324, %v2325
    %v2327 = vrot.slane %v2326, 4
    %v2328 = vadd.f32 %v2326, %v2327
    %v2329 = vrot.slane %v2328, 2
    %v2330 = vadd.f32 %v2328, %v2329
    %v2331 = vrot.slane %v2330, 1
    %v2332 = vadd.f32 %v2330, %v2331
    %v2333 = vsel %vm870, %v2304, 0.0
    %v2334 = vsel %vm870, %v2305, 0.0
    %v2335 = vadd.f32 %v2333, %v2334
    %v2336 = vsel %vm870, %v2306, 0.0
    %v2337 = vadd.f32 %v2335, %v2336
    %v2338 = vsel %vm870, %v2307, 0.0
    %v2339 = vadd.f32 %v2337, %v2338
    %v2340 = vsel %vm870, %v2308, 0.0
    %v2341 = vadd.f32 %v2339, %v2340
    %v2342 = vsel %vm870, %v2309, 0.0
    %v2343 = vadd.f32 %v2341, %v2342
    %v2344 = vsel %vm870, %v2310, 0.0
    %v2345 = vadd.f32 %v2343, %v2344
    %v2346 = vsel %vm870, %v2311, 0.0
    %v2347 = vadd.f32 %v2345, %v2346
    %v2348 = vrot.slane %v2347, 4
    %v2349 = vadd.f32 %v2347, %v2348
    %v2350 = vrot.slane %v2349, 2
    %v2351 = vadd.f32 %v2349, %v2350
    %v2352 = vrot.slane %v2351, 1
    %v2353 = vadd.f32 %v2351, %v2352
    %v2354 = vmul.f32 %v2332, %v1249
    %v2355 = vmul.f32 %v2353, %v1249
    %v2356 = vadd.f32 %v2354, 1e-05
    %v2357 = vadd.f32 %v2355, 1e-05
    %v2358 = vrsqrt.pop %v2356
    %v2359 = vrsqrt.pop %v2357
    %v2360 = vmul.f32 %v2280, %v2358
    %v2361 = vmul.f32 %v2281, %v2358
    %v2362 = vmul.f32 %v2282, %v2358
    %v2363 = vmul.f32 %v2283, %v2358
    %v2364 = vmul.f32 %v2284, %v2358
    %v2365 = vmul.f32 %v2285, %v2358
    %v2366 = vmul.f32 %v2286, %v2358
    %v2367 = vmul.f32 %v2287, %v2358
    %v2368 = vmul.f32 %v2288, %v2359
    %v2369 = vmul.f32 %v2289, %v2359
    %v2370 = vmul.f32 %v2290, %v2359
    %v2371 = vmul.f32 %v2291, %v2359
    %v2372 = vmul.f32 %v2292, %v2359
    %v2373 = vmul.f32 %v2293, %v2359
    %v2374 = vmul.f32 %v2294, %v2359
    %v2375 = vmul.f32 %v2295, %v2359
    %2376 = vxpose.xlu0.b32.start [1/16] %v2360, 128
    %2377 = vxpose.xlu0.b32.cont [2/16] %v2361, 128
    %2378 = vxpose.xlu0.b32.cont [3/16] %v2362, 128
    %2379 = vxpose.xlu0.b32.cont [4/16] %v2363, 128
    %2380 = vxpose.xlu0.b32.cont [5/16] %v2364, 128
    %2381 = vxpose.xlu0.b32.cont [6/16] %v2365, 128
    %2382 = vxpose.xlu0.b32.cont [7/16] %v2366, 128
    %2383 = vxpose.xlu0.b32.cont [8/16] %v2367, 128
    %2384 = vxpose.xlu0.b32.cont [9/16] 0.0, 128
    %2385 = vxpose.xlu0.b32.cont [10/16] 0.0, 128
    %2386 = vxpose.xlu0.b32.cont [11/16] 0.0, 128
    %2387 = vxpose.xlu0.b32.cont [12/16] 0.0, 128
    %2388 = vxpose.xlu0.b32.cont [13/16] 0.0, 128
    %2389 = vxpose.xlu0.b32.cont [14/16] 0.0, 128
    %2390 = vxpose.xlu0.b32.cont [15/16] 0.0, 128
    %2391 = vxpose.xlu0.b32.end [16/16] 0.0, 128
    %v2392 = vpop.trf.xlu0
    %v2393 = vpop.trf.xlu0
    %v2394 = vpop.trf.xlu0
    %v2395 = vpop.trf.xlu0
    %v2396 = vpop.trf.xlu0
    %v2397 = vpop.trf.xlu0
    %v2398 = vpop.trf.xlu0
    %v2399 = vpop.trf.xlu0
    %v2400 = vpop.trf.xlu0
    %v2401 = vpop.trf.xlu0
    %v2402 = vpop.trf.xlu0
    %v2403 = vpop.trf.xlu0
    %v2404 = vpop.trf.xlu0
    %v2405 = vpop.trf.xlu0
    %v2406 = vpop.trf.xlu0
    %v2407 = vpop.trf.xlu0
    %2408 = vxpose.xlu0.b32.start [1/16] %v2368, 128
    %2409 = vxpose.xlu0.b32.cont [2/16] %v2369, 128
    %2410 = vxpose.xlu0.b32.cont [3/16] %v2370, 128
    %2411 = vxpose.xlu0.b32.cont [4/16] %v2371, 128
    %2412 = vxpose.xlu0.b32.cont [5/16] %v2372, 128
    %2413 = vxpose.xlu0.b32.cont [6/16] %v2373, 128
    %2414 = vxpose.xlu0.b32.cont [7/16] %v2374, 128
    %2415 = vxpose.xlu0.b32.cont [8/16] %v2375, 128
    %2416 = vxpose.xlu0.b32.cont [9/16] 0.0, 128
    %2417 = vxpose.xlu0.b32.cont [10/16] 0.0, 128
    %2418 = vxpose.xlu0.b32.cont [11/16] 0.0, 128
    %2419 = vxpose.xlu0.b32.cont [12/16] 0.0, 128
    %2420 = vxpose.xlu0.b32.cont [13/16] 0.0, 128
    %2421 = vxpose.xlu0.b32.cont [14/16] 0.0, 128
    %2422 = vxpose.xlu0.b32.cont [15/16] 0.0, 128
    %2423 = vxpose.xlu0.b32.end [16/16] 0.0, 128
    %v2424 = vpop.trf.xlu0
    %v2425 = vpop.trf.xlu0
    %v2426 = vpop.trf.xlu0
    %v2427 = vpop.trf.xlu0
    %v2428 = vpop.trf.xlu0
    %v2429 = vpop.trf.xlu0
    %v2430 = vpop.trf.xlu0
    %v2431 = vpop.trf.xlu0
    %v2432 = vpop.trf.xlu0
    %v2433 = vpop.trf.xlu0
    %v2434 = vpop.trf.xlu0
    %v2435 = vpop.trf.xlu0
    %v2436 = vpop.trf.xlu0
    %v2437 = vpop.trf.xlu0
    %v2438 = vpop.trf.xlu0
    %v2439 = vpop.trf.xlu0
    %2440 = vst.msk [vmem:[#allocation5] sm:$0xff] %vm987, %v2392
    %2441 = vst.msk [vmem:[#allocation5 + $0x8] sm:$0xff] %vm987, %v2424
    // Predicated region
    $region18: #{tpu_custom_call.1} parent=1 // pred_check
      _
    $region19: #{tpu_custom_call.1} parent=1 // pred_check_branch
      %2443 = sbr.rel (0) target = $region21
    $region20: #{tpu_custom_call.1} parent=1 // pred_region
      %s2445 = ssub.s32 256, 256
      %2446 = vsyncadd [#allocation4], %s2445
      %s2447 = sshll.u32 [#allocation5], 4
      %s2448 = int_to_ptr.vmem [resolvable:$true] %s2447
      %2453 = dma.vmem_to_hbm [thread:$0]  %s2448, 256, %s3, [#allocation4], 128, 128, 8
    $region21: #{tpu_custom_call.1} parent=1 // pred_fallthru
      _
    // Predicated region
    $region22: #{tpu_custom_call.1} parent=1 // pred_check
      _
    $region23: #{tpu_custom_call.1} parent=1 // pred_check_branch
      %2455 = sbr.rel (0) target = $region25
    $region24: #{tpu_custom_call.1} parent=1 // pred_region
      %2456 = dma.done [#allocation4], 256
    $region25: #{tpu_custom_call.1} parent=1 // pred_fallthru
      _
    %2457 = vsyncpa [#allocation3], 1
    %2458 = vsyncpa [#allocation4], 1

</llo_original>
